<compile_context>
chip_gen: v7x
topology: tpu7x:2x2x1
jax: 0.10.0
libtpu: 0.0.40
codegen_flags: <defaults>
</compile_context>

<pallas_src>
import functools

import jax
import jax.numpy as jnp
from jax.experimental import pallas as pl
from jax.experimental.pallas import tpu as pltpu  # noqa: F401  (TPU backend)


LANE = 128      # vreg lane width
SUBLANE = 8     # f32 sublane height

# Packed-parameter buffer layout: one (144, 128) f32 array, every section
# 8-row (sublane) aligned and 128-lane wide:
#   rows [  0,   8) : W1 (n_feature, n_hidden) zero-padded          -> layer-1 FMAs
#   rows [  8,  16) : b1 (1, n_hidden) zero-padded, lane 127 := 1.0 -> constant-1
#                     hidden lane feeding the folded layer-2 bias
#   rows [ 16, 144) : W2 (n_hidden, n_output) zero-padded to (128,128),
#                     row 127 := b2 (bias folded into the matmul)
W1_ROW = 0
B1_ROW = 8
W2_ROW = 16
PARAM_ROWS = W2_ROW + LANE          # 144
ONES_LANE = LANE - 1                # padded hidden lane carrying the constant 1


def _round_up(v, m):
    return (v + m - 1) // m * m


def mlp_kernel(x_ref, p_ref, o_ref):
    """Fused 2-layer MLP: relu(x @ W1 + b1) @ W2   (b2 folded into W2)."""
    x = x_ref[...]                              # (N, F), F tiny (3)
    n_feature = x_ref.shape[1]

    # ---- Layer 1: K = n_feature is tiny -> VPU broadcast-FMAs, keep the MXU
    # free for the real matmul below.  (If n_feature ever grows past ~16,
    # switch this to an MXU contraction instead — the XLU broadcast count
    # scales linearly with n_feature.)
    h = x[:, 0:1] * p_ref[W1_ROW:W1_ROW + 1, :]
    for k in range(1, n_feature):               # unrolled at trace time
        h = h + x[:, k:k + 1] * p_ref[W1_ROW + k:W1_ROW + k + 1, :]
    b1 = p_ref[B1_ROW:B1_ROW + 1, :]            # (1, 128); lane 127 == 1.0
    h = jnp.maximum(h + b1, 0.0)                # padded lanes stay 0; lane 127 -> 1

    # ---- Layer 2: (N,128) @ (128,128) on the MXU, lane-dense output store.
    # b2 rides in W2 row 127 against the constant-1 hidden lane.  Explicit
    # HIGHEST precision keeps the f32 matmul multi-pass on bf16-native MXUs.
    w2 = p_ref[W2_ROW:W2_ROW + LANE, :]         # (128, 128), sublane-aligned view
    o_ref[...] = jnp.dot(
        h, w2,
        precision=jax.lax.Precision.HIGHEST,
        preferred_element_type=jnp.float32,
    ).astype(o_ref.dtype)


def pack_params(w1, b1, w2, b2):
    """One-time padding/packing of parameters into a single (144, 128) buffer.

    w1: (n_feature, n_hidden)   (== PyTorch hidden.weight.T)
    b1: (1, n_hidden) or (n_hidden,)
    w2: (n_hidden, n_output)    (== PyTorch out.weight.T)
    b2: (1, n_output) or (n_output,)
    """
    n_feature, n_hidden = w1.shape
    n_output = w2.shape[1]
    # Folding b2 into W2 needs at least one free (padded) hidden lane.
    assert n_feature <= SUBLANE and n_hidden < LANE and n_output <= LANE

    b1 = jnp.reshape(jnp.asarray(b1, jnp.float32), (n_hidden,))
    b2 = jnp.reshape(jnp.asarray(b2, jnp.float32), (n_output,))

    p = jnp.zeros((PARAM_ROWS, LANE), jnp.float32)
    p = p.at[W1_ROW:W1_ROW + n_feature, :n_hidden].set(w1)
    p = p.at[B1_ROW, :n_hidden].set(b1)
    p = p.at[B1_ROW, ONES_LANE].set(1.0)                 # constant-1 hidden lane
    p = p.at[W2_ROW:W2_ROW + n_hidden, :n_output].set(w2)
    p = p.at[W2_ROW + ONES_LANE, :n_output].set(b2)      # b2 folded into W2
    return p


@functools.partial(jax.jit, static_argnames=("n_output",))
def net_forward(x, params, n_output):
    """Fused MLP forward.  x: (N, n_feature) f32, params: packed (144,128) f32."""
    n, n_feature = x.shape
    n_pad = _round_up(n, SUBLANE)
    if n_pad != n:                               # only x needs per-call handling
        x = jnp.pad(x, ((0, n_pad - n), (0, 0)))

    flops = 2 * n_pad * LANE * LANE + 2 * n_pad * n_feature * LANE
    bytes_accessed = 4 * (n_pad * n_feature + PARAM_ROWS * LANE + n_pad * LANE)

    # Tiny problem: one grid point, full-array blocks, single parameter DMA.
    # TODO(synk): if N grows to many thousands of rows, tile over rows only
    # (grid=(N//tm,), dimension_semantics=("parallel",)) so v7x's 2 TensorCores
    # split the batch; weights stay full-block.
    out_p = pl.pallas_call(
        mlp_kernel,
        out_shape=jax.ShapeDtypeStruct((n_pad, LANE), jnp.float32),
        in_specs=[
            pl.BlockSpec(x.shape, lambda: (0, 0)),
            pl.BlockSpec((PARAM_ROWS, LANE), lambda: (0, 0)),
        ],
        out_specs=pl.BlockSpec((n_pad, LANE), lambda: (0, 0)),
        cost_estimate=pl.CostEstimate(
            flops=flops, transcendentals=0, bytes_accessed=bytes_accessed),
    )(x, params)

    return out_p[:n, :n_output]


def init_linear_params(key, fan_in, fan_out):
    """Deterministic init mimicking PyTorch nn.Linear default U(-1/sqrt(fan_in), .)."""
    kw, kb = jax.random.split(key)
    bound = 1.0 / jnp.sqrt(jnp.float32(fan_in))
    # Stored directly in (in, out) layout (== PyTorch weight.T).
    w = jax.random.uniform(kw, (fan_in, fan_out), jnp.float32, -bound, bound)
    b = jax.random.uniform(kb, (1, fan_out), jnp.float32, -bound, bound)
    return w, b


if __name__ == "__main__":
    # Match the surrounding script: x = cat(normal(2*ones(100,3),1), normal(-2*ones(100,3),1))
    n_feature, n_hidden, n_output = 3, 32, 2

    key = jax.random.PRNGKey(0)
    k_x0, k_x1, k_l1, k_l2 = jax.random.split(key, 4)

    x0 = 2.0 + jax.random.normal(k_x0, (100, n_feature), jnp.float32)
    x1 = -2.0 + jax.random.normal(k_x1, (100, n_feature), jnp.float32)
    x = jnp.concatenate([x0, x1], axis=0)       # (200, 3)

    w1, b1 = init_linear_params(k_l1, n_feature, n_hidden)
    w2, b2 = init_linear_params(k_l2, n_hidden, n_output)

    # One-time parameter padding/packing (hoisted out of the per-call path).
    params = pack_params(w1, b1, w2, b2)

    out = net_forward(x, params, n_output)
    jax.block_until_ready(out)

    # Pure-JAX reference of the same forward pass (full-precision f32 matmuls).
    hi = jax.lax.Precision.HIGHEST
    ref_h = jnp.maximum(jnp.dot(x, w1, precision=hi) + b1, 0.0)
    ref = jnp.dot(ref_h, w2, precision=hi) + b2

    assert out.shape == (200, n_output)
    assert jnp.allclose(out, ref, atol=1e-4, rtol=1e-4)

    print("KERNEL_OK")
</pallas_src>

<mosaic_0001>
module attributes {stable_mosaic.version = 11 : i64} {
  func.func @mlp_kernel(%arg0: memref<200x3xf32, #tpu.memory_space<vmem>>, %arg1: memref<144x128xf32, #tpu.memory_space<vmem>>, %arg2: memref<200x128xf32, #tpu.memory_space<vmem>>) attributes {dimension_semantics = [], scalar_prefetch = 0 : i64, scratch_operands = 0 : i64, tpu.core_type = #tpu.core_type<tc>} {
    %c0 = arith.constant 0 : index
    %c0_0 = arith.constant 0 : index
    %0 = vector.load %arg0[%c0, %c0_0] : memref<200x3xf32, #tpu.memory_space<vmem>>, vector<200x3xf32>
    %1 = vector.extract_strided_slice %0 {offsets = [0, 0], sizes = [200, 1], strides = [1, 1]} : vector<200x3xf32> to vector<200x1xf32>
    %c0_1 = arith.constant 0 : index
    %c0_2 = arith.constant 0 : index
    %2 = vector.load %arg1[%c0_1, %c0_2] : memref<144x128xf32, #tpu.memory_space<vmem>>, vector<1x128xf32>
    %3 = vector.broadcast %1 : vector<200x1xf32> to vector<200x128xf32>
    %4 = vector.broadcast %2 : vector<1x128xf32> to vector<200x128xf32>
    %5 = arith.mulf %3, %4 : vector<200x128xf32>
    %6 = vector.extract_strided_slice %0 {offsets = [0, 1], sizes = [200, 1], strides = [1, 1]} : vector<200x3xf32> to vector<200x1xf32>
    %c1 = arith.constant 1 : index
    %c0_3 = arith.constant 0 : index
    %7 = vector.load %arg1[%c1, %c0_3] : memref<144x128xf32, #tpu.memory_space<vmem>>, vector<1x128xf32>
    %8 = vector.broadcast %6 : vector<200x1xf32> to vector<200x128xf32>
    %9 = vector.broadcast %7 : vector<1x128xf32> to vector<200x128xf32>
    %10 = arith.mulf %8, %9 : vector<200x128xf32>
    %11 = arith.addf %5, %10 : vector<200x128xf32>
    %12 = vector.extract_strided_slice %0 {offsets = [0, 2], sizes = [200, 1], strides = [1, 1]} : vector<200x3xf32> to vector<200x1xf32>
    %c2 = arith.constant 2 : index
    %c0_4 = arith.constant 0 : index
    %13 = vector.load %arg1[%c2, %c0_4] : memref<144x128xf32, #tpu.memory_space<vmem>>, vector<1x128xf32>
    %14 = vector.broadcast %12 : vector<200x1xf32> to vector<200x128xf32>
    %15 = vector.broadcast %13 : vector<1x128xf32> to vector<200x128xf32>
    %16 = arith.mulf %14, %15 : vector<200x128xf32>
    %17 = arith.addf %11, %16 : vector<200x128xf32>
    %c8 = arith.constant 8 : index
    %c0_5 = arith.constant 0 : index
    %18 = vector.load %arg1[%c8, %c0_5] : memref<144x128xf32, #tpu.memory_space<vmem>>, vector<1x128xf32>
    %19 = vector.broadcast %18 : vector<1x128xf32> to vector<200x128xf32>
    %20 = arith.addf %17, %19 : vector<200x128xf32>
    %cst = arith.constant 0.000000e+00 : f32
    %21 = vector.broadcast %cst : f32 to vector<200x128xf32>
    %22 = arith.maximumf %20, %21 : vector<200x128xf32>
    %c16 = arith.constant 16 : index
    %c0_6 = arith.constant 0 : index
    %23 = vector.load %arg1[%c16, %c0_6] : memref<144x128xf32, #tpu.memory_space<vmem>>, vector<128x128xf32>
    %cst_7 = arith.constant dense<0.000000e+00> : vector<200x128xf32>
    %24 = tpu.matmul %22, %23, %cst_7 {dimension_numbers = #tpu.dot_dimension_numbers<[1], [0], [0], [1], [0, 0, 1, 1], [], []>, precision = #tpu.contract_precision<fp32>} : vector<200x128xf32>, vector<128x128xf32>, vector<200x128xf32> -> vector<200x128xf32>
    %c0_8 = arith.constant 0 : index
    %c0_9 = arith.constant 0 : index
    %25 = vector.load %arg2[%c0_8, %c0_9] : memref<200x128xf32, #tpu.memory_space<vmem>>, vector<200x128xf32>
    tpu.vector_store %arg2[%c0_8, %c0_9], %24 {strides = array<i32>} : memref<200x128xf32, #tpu.memory_space<vmem>>, vector<200x128xf32>,
    return
  }
}

</mosaic_0001>

<llo_original>
// kernel: net_forward.1
$region0: #{net_forward.1}
  #allocation0 [shape = 'u32[]', space=smem, size = 0x4, offset = 0x4, fixed_abs, tag = 'smem constant byte address 0x4 - core index']
  #allocation1 [shape = 'u32[144,128]{1,0:T(1,128)}', space=vmem, size = 0x12000, scoped, tag = 'internal scratch']
  %s0 = inlined_call_operand.vmem [shape: f32[200,3], index: 0, kind: input, shape index: {}]
  %s1 = inlined_call_operand.vmem [shape: f32[144,128], index: 1, kind: input, shape index: {}]
  %s2 = inlined_call_operand.vmem [shape: f32[200,128], index: 2, kind: output, shape index: {}]
  %s3 = sld [smem:[#allocation0]]
  $region18: #{net_forward.1} parent=0
    _
  %s5 = ssub.s32 1, %s3
  %s6 = scalar_select 0, %s5, %s3
  // Predicated region
  $region2: #{net_forward.1} parent=0 // pred_check
    _
  $region3: #{net_forward.1} parent=0 // pred_check_branch
    %8 = sbr.rel (0) target = $region5
  $region4: #{net_forward.1} parent=0 // pred_region
    _
  $region5: #{net_forward.1} parent=0 // pred_fallthru
    _
  // Predicated region
  $region6: #{net_forward.1} parent=0 // pred_check
    _
  $region7: #{net_forward.1} parent=0 // pred_check_branch
    %10 = sbr.rel (0) target = $region9
  $region8: #{net_forward.1} parent=0 // pred_region
    _
  $region9: #{net_forward.1} parent=0 // pred_fallthru
    _
  %v11 = vld [vmem:[%s0] sm:$0xff]
  %v12 = vld [vmem:[%s0 + $0x8] sm:$0xff]
  %v13 = vld [vmem:[%s0 + $0x10] sm:$0xff]
  %v14 = vld [vmem:[%s0 + $0x18] sm:$0xff]
  %v15 = vld [vmem:[%s0 + $0x20] sm:$0xff]
  %v16 = vld [vmem:[%s0 + $0x28] sm:$0xff]
  %v17 = vld [vmem:[%s0 + $0x30] sm:$0xff]
  %v18 = vld [vmem:[%s0 + $0x38] sm:$0xff]
  %v19 = vld [vmem:[%s0 + $0x40] sm:$0xff]
  %v20 = vld [vmem:[%s0 + $0x48] sm:$0xff]
  %v21 = vld [vmem:[%s0 + $0x50] sm:$0xff]
  %v22 = vld [vmem:[%s0 + $0x58] sm:$0xff]
  %v23 = vld [vmem:[%s0 + $0x60] sm:$0xff]
  %v24 = vld [vmem:[%s0 + $0x68] sm:$0xff]
  %v25 = vld [vmem:[%s0 + $0x70] sm:$0xff]
  %v26 = vld [vmem:[%s0 + $0x78] sm:$0xff]
  %v27 = vld [vmem:[%s0 + $0x80] sm:$0xff]
  %v28 = vld [vmem:[%s0 + $0x88] sm:$0xff]
  %v29 = vld [vmem:[%s0 + $0x90] sm:$0xff]
  %v30 = vld [vmem:[%s0 + $0x98] sm:$0xff]
  %v31 = vld [vmem:[%s0 + $0xa0] sm:$0xff]
  %v32 = vld [vmem:[%s0 + $0xa8] sm:$0xff]
  %v33 = vld [vmem:[%s0 + $0xb0] sm:$0xff]
  %v34 = vld [vmem:[%s0 + $0xb8] sm:$0xff]
  %v35 = vld [vmem:[%s0 + $0xc0] sm:$0xff]
  %v36 = vld [vmem:[%s1] sm:$0x1]
  %38 = vset.pattern.permute.xlu0 0
  %39 = vperm.xlu0 %38, %v11
  %v40 = vpop.permute.xlu0 %39
  %43 = vset.pattern.permute.xlu0 0
  %44 = vperm.xlu0 %43, %v12
  %v45 = vpop.permute.xlu0 %44
  %48 = vset.pattern.permute.xlu0 0
  %49 = vperm.xlu0 %48, %v13
  %v50 = vpop.permute.xlu0 %49
  %53 = vset.pattern.permute.xlu0 0
  %54 = vperm.xlu0 %53, %v14
  %v55 = vpop.permute.xlu0 %54
  %58 = vset.pattern.permute.xlu0 0
  %59 = vperm.xlu0 %58, %v15
  %v60 = vpop.permute.xlu0 %59
  %63 = vset.pattern.permute.xlu0 0
  %64 = vperm.xlu0 %63, %v16
  %v65 = vpop.permute.xlu0 %64
  %68 = vset.pattern.permute.xlu0 0
  %69 = vperm.xlu0 %68, %v17
  %v70 = vpop.permute.xlu0 %69
  %73 = vset.pattern.permute.xlu0 0
  %74 = vperm.xlu0 %73, %v18
  %v75 = vpop.permute.xlu0 %74
  %78 = vset.pattern.permute.xlu0 0
  %79 = vperm.xlu0 %78, %v19
  %v80 = vpop.permute.xlu0 %79
  %83 = vset.pattern.permute.xlu0 0
  %84 = vperm.xlu0 %83, %v20
  %v85 = vpop.permute.xlu0 %84
  %88 = vset.pattern.permute.xlu0 0
  %89 = vperm.xlu0 %88, %v21
  %v90 = vpop.permute.xlu0 %89
  %93 = vset.pattern.permute.xlu0 0
  %94 = vperm.xlu0 %93, %v22
  %v95 = vpop.permute.xlu0 %94
  %98 = vset.pattern.permute.xlu0 0
  %99 = vperm.xlu0 %98, %v23
  %v100 = vpop.permute.xlu0 %99
  %103 = vset.pattern.permute.xlu0 0
  %104 = vperm.xlu0 %103, %v24
  %v105 = vpop.permute.xlu0 %104
  %108 = vset.pattern.permute.xlu0 0
  %109 = vperm.xlu0 %108, %v25
  %v110 = vpop.permute.xlu0 %109
  %113 = vset.pattern.permute.xlu0 0
  %114 = vperm.xlu0 %113, %v26
  %v115 = vpop.permute.xlu0 %114
  %118 = vset.pattern.permute.xlu0 0
  %119 = vperm.xlu0 %118, %v27
  %v120 = vpop.permute.xlu0 %119
  %123 = vset.pattern.permute.xlu0 0
  %124 = vperm.xlu0 %123, %v28
  %v125 = vpop.permute.xlu0 %124
  %128 = vset.pattern.permute.xlu0 0
  %129 = vperm.xlu0 %128, %v29
  %v130 = vpop.permute.xlu0 %129
  %133 = vset.pattern.permute.xlu0 0
  %134 = vperm.xlu0 %133, %v30
  %v135 = vpop.permute.xlu0 %134
  %138 = vset.pattern.permute.xlu0 0
  %139 = vperm.xlu0 %138, %v31
  %v140 = vpop.permute.xlu0 %139
  %143 = vset.pattern.permute.xlu0 0
  %144 = vperm.xlu0 %143, %v32
  %v145 = vpop.permute.xlu0 %144
  %148 = vset.pattern.permute.xlu0 0
  %149 = vperm.xlu0 %148, %v33
  %v150 = vpop.permute.xlu0 %149
  %153 = vset.pattern.permute.xlu0 0
  %154 = vperm.xlu0 %153, %v34
  %v155 = vpop.permute.xlu0 %154
  %158 = vset.pattern.permute.xlu0 0
  %159 = vperm.xlu0 %158, %v35
  %v160 = vpop.permute.xlu0 %159
  %v162 = vlaneseq
  %v163 = vshrl.u32 %v162, 7
  %v164 = vsub.s32 0, %v163
  %v165 = vrot.slane %v36, %v164
  %v166 = vmul.f32 %v40, %v165
  %v167 = vmul.f32 %v45, %v165
  %v168 = vmul.f32 %v50, %v165
  %v169 = vmul.f32 %v55, %v165
  %v170 = vmul.f32 %v60, %v165
  %v171 = vmul.f32 %v65, %v165
  %v172 = vmul.f32 %v70, %v165
  %v173 = vmul.f32 %v75, %v165
  %v174 = vmul.f32 %v80, %v165
  %v175 = vmul.f32 %v85, %v165
  %v176 = vmul.f32 %v90, %v165
  %v177 = vmul.f32 %v95, %v165
  %v178 = vmul.f32 %v100, %v165
  %v179 = vmul.f32 %v105, %v165
  %v180 = vmul.f32 %v110, %v165
  %v181 = vmul.f32 %v115, %v165
  %v182 = vmul.f32 %v120, %v165
  %v183 = vmul.f32 %v125, %v165
  %v184 = vmul.f32 %v130, %v165
  %v185 = vmul.f32 %v135, %v165
  %v186 = vmul.f32 %v140, %v165
  %v187 = vmul.f32 %v145, %v165
  %v188 = vmul.f32 %v150, %v165
  %v189 = vmul.f32 %v155, %v165
  %v190 = vmul.f32 %v160, %v165
  %v191 = vld [vmem:[%s1 + $0x1] sm:$0x1]
  %192 = vset.pattern.permute.xlu0 1
  %193 = vperm.xlu0 %192, %v11
  %v194 = vpop.permute.xlu0 %193
  %196 = vset.pattern.permute.xlu0 1
  %197 = vperm.xlu0 %196, %v12
  %v198 = vpop.permute.xlu0 %197
  %200 = vset.pattern.permute.xlu0 1
  %201 = vperm.xlu0 %200, %v13
  %v202 = vpop.permute.xlu0 %201
  %204 = vset.pattern.permute.xlu0 1
  %205 = vperm.xlu0 %204, %v14
  %v206 = vpop.permute.xlu0 %205
  %208 = vset.pattern.permute.xlu0 1
  %209 = vperm.xlu0 %208, %v15
  %v210 = vpop.permute.xlu0 %209
  %212 = vset.pattern.permute.xlu0 1
  %213 = vperm.xlu0 %212, %v16
  %v214 = vpop.permute.xlu0 %213
  %216 = vset.pattern.permute.xlu0 1
  %217 = vperm.xlu0 %216, %v17
  %v218 = vpop.permute.xlu0 %217
  %220 = vset.pattern.permute.xlu0 1
  %221 = vperm.xlu0 %220, %v18
  %v222 = vpop.permute.xlu0 %221
  %224 = vset.pattern.permute.xlu0 1
  %225 = vperm.xlu0 %224, %v19
  %v226 = vpop.permute.xlu0 %225
  %228 = vset.pattern.permute.xlu0 1
  %229 = vperm.xlu0 %228, %v20
  %v230 = vpop.permute.xlu0 %229
  %232 = vset.pattern.permute.xlu0 1
  %233 = vperm.xlu0 %232, %v21
  %v234 = vpop.permute.xlu0 %233
  %236 = vset.pattern.permute.xlu0 1
  %237 = vperm.xlu0 %236, %v22
  %v238 = vpop.permute.xlu0 %237
  %240 = vset.pattern.permute.xlu0 1
  %241 = vperm.xlu0 %240, %v23
  %v242 = vpop.permute.xlu0 %241
  %244 = vset.pattern.permute.xlu0 1
  %245 = vperm.xlu0 %244, %v24
  %v246 = vpop.permute.xlu0 %245
  %248 = vset.pattern.permute.xlu0 1
  %249 = vperm.xlu0 %248, %v25
  %v250 = vpop.permute.xlu0 %249
  %252 = vset.pattern.permute.xlu0 1
  %253 = vperm.xlu0 %252, %v26
  %v254 = vpop.permute.xlu0 %253
  %256 = vset.pattern.permute.xlu0 1
  %257 = vperm.xlu0 %256, %v27
  %v258 = vpop.permute.xlu0 %257
  %260 = vset.pattern.permute.xlu0 1
  %261 = vperm.xlu0 %260, %v28
  %v262 = vpop.permute.xlu0 %261
  %264 = vset.pattern.permute.xlu0 1
  %265 = vperm.xlu0 %264, %v29
  %v266 = vpop.permute.xlu0 %265
  %268 = vset.pattern.permute.xlu0 1
  %269 = vperm.xlu0 %268, %v30
  %v270 = vpop.permute.xlu0 %269
  %272 = vset.pattern.permute.xlu0 1
  %273 = vperm.xlu0 %272, %v31
  %v274 = vpop.permute.xlu0 %273
  %276 = vset.pattern.permute.xlu0 1
  %277 = vperm.xlu0 %276, %v32
  %v278 = vpop.permute.xlu0 %277
  %280 = vset.pattern.permute.xlu0 1
  %281 = vperm.xlu0 %280, %v33
  %v282 = vpop.permute.xlu0 %281
  %284 = vset.pattern.permute.xlu0 1
  %285 = vperm.xlu0 %284, %v34
  %v286 = vpop.permute.xlu0 %285
  %288 = vset.pattern.permute.xlu0 1
  %289 = vperm.xlu0 %288, %v35
  %v290 = vpop.permute.xlu0 %289
  %v292 = vlaneseq
  %v293 = vshrl.u32 %v292, 7
  %v294 = vsub.s32 0, %v293
  %v295 = vrot.slane %v191, %v294
  %v296 = vmul.f32 %v194, %v295
  %v297 = vmul.f32 %v198, %v295
  %v298 = vmul.f32 %v202, %v295
  %v299 = vmul.f32 %v206, %v295
  %v300 = vmul.f32 %v210, %v295
  %v301 = vmul.f32 %v214, %v295
  %v302 = vmul.f32 %v218, %v295
  %v303 = vmul.f32 %v222, %v295
  %v304 = vmul.f32 %v226, %v295
  %v305 = vmul.f32 %v230, %v295
  %v306 = vmul.f32 %v234, %v295
  %v307 = vmul.f32 %v238, %v295
  %v308 = vmul.f32 %v242, %v295
  %v309 = vmul.f32 %v246, %v295
  %v310 = vmul.f32 %v250, %v295
  %v311 = vmul.f32 %v254, %v295
  %v312 = vmul.f32 %v258, %v295
  %v313 = vmul.f32 %v262, %v295
  %v314 = vmul.f32 %v266, %v295
  %v315 = vmul.f32 %v270, %v295
  %v316 = vmul.f32 %v274, %v295
  %v317 = vmul.f32 %v278, %v295
  %v318 = vmul.f32 %v282, %v295
  %v319 = vmul.f32 %v286, %v295
  %v320 = vmul.f32 %v290, %v295
  %v321 = vadd.f32 %v166, %v296
  %v322 = vadd.f32 %v167, %v297
  %v323 = vadd.f32 %v168, %v298
  %v324 = vadd.f32 %v169, %v299
  %v325 = vadd.f32 %v170, %v300
  %v326 = vadd.f32 %v171, %v301
  %v327 = vadd.f32 %v172, %v302
  %v328 = vadd.f32 %v173, %v303
  %v329 = vadd.f32 %v174, %v304
  %v330 = vadd.f32 %v175, %v305
  %v331 = vadd.f32 %v176, %v306
  %v332 = vadd.f32 %v177, %v307
  %v333 = vadd.f32 %v178, %v308
  %v334 = vadd.f32 %v179, %v309
  %v335 = vadd.f32 %v180, %v310
  %v336 = vadd.f32 %v181, %v311
  %v337 = vadd.f32 %v182, %v312
  %v338 = vadd.f32 %v183, %v313
  %v339 = vadd.f32 %v184, %v314
  %v340 = vadd.f32 %v185, %v315
  %v341 = vadd.f32 %v186, %v316
  %v342 = vadd.f32 %v187, %v317
  %v343 = vadd.f32 %v188, %v318
  %v344 = vadd.f32 %v189, %v319
  %v345 = vadd.f32 %v190, %v320
  %v346 = vld [vmem:[%s1 + $0x2] sm:$0x1]
  %347 = vset.pattern.permute.xlu0 2
  %348 = vperm.xlu0 %347, %v11
  %v349 = vpop.permute.xlu0 %348
  %351 = vset.pattern.permute.xlu0 2
  %352 = vperm.xlu0 %351, %v12
  %v353 = vpop.permute.xlu0 %352
  %355 = vset.pattern.permute.xlu0 2
  %356 = vperm.xlu0 %355, %v13
  %v357 = vpop.permute.xlu0 %356
  %359 = vset.pattern.permute.xlu0 2
  %360 = vperm.xlu0 %359, %v14
  %v361 = vpop.permute.xlu0 %360
  %363 = vset.pattern.permute.xlu0 2
  %364 = vperm.xlu0 %363, %v15
  %v365 = vpop.permute.xlu0 %364
  %367 = vset.pattern.permute.xlu0 2
  %368 = vperm.xlu0 %367, %v16
  %v369 = vpop.permute.xlu0 %368
  %371 = vset.pattern.permute.xlu0 2
  %372 = vperm.xlu0 %371, %v17
  %v373 = vpop.permute.xlu0 %372
  %375 = vset.pattern.permute.xlu0 2
  %376 = vperm.xlu0 %375, %v18
  %v377 = vpop.permute.xlu0 %376
  %379 = vset.pattern.permute.xlu0 2
  %380 = vperm.xlu0 %379, %v19
  %v381 = vpop.permute.xlu0 %380
  %383 = vset.pattern.permute.xlu0 2
  %384 = vperm.xlu0 %383, %v20
  %v385 = vpop.permute.xlu0 %384
  %387 = vset.pattern.permute.xlu0 2
  %388 = vperm.xlu0 %387, %v21
  %v389 = vpop.permute.xlu0 %388
  %391 = vset.pattern.permute.xlu0 2
  %392 = vperm.xlu0 %391, %v22
  %v393 = vpop.permute.xlu0 %392
  %395 = vset.pattern.permute.xlu0 2
  %396 = vperm.xlu0 %395, %v23
  %v397 = vpop.permute.xlu0 %396
  %399 = vset.pattern.permute.xlu0 2
  %400 = vperm.xlu0 %399, %v24
  %v401 = vpop.permute.xlu0 %400
  %403 = vset.pattern.permute.xlu0 2
  %404 = vperm.xlu0 %403, %v25
  %v405 = vpop.permute.xlu0 %404
  %407 = vset.pattern.permute.xlu0 2
  %408 = vperm.xlu0 %407, %v26
  %v409 = vpop.permute.xlu0 %408
  %411 = vset.pattern.permute.xlu0 2
  %412 = vperm.xlu0 %411, %v27
  %v413 = vpop.permute.xlu0 %412
  %415 = vset.pattern.permute.xlu0 2
  %416 = vperm.xlu0 %415, %v28
  %v417 = vpop.permute.xlu0 %416
  %419 = vset.pattern.permute.xlu0 2
  %420 = vperm.xlu0 %419, %v29
  %v421 = vpop.permute.xlu0 %420
  %423 = vset.pattern.permute.xlu0 2
  %424 = vperm.xlu0 %423, %v30
  %v425 = vpop.permute.xlu0 %424
  %427 = vset.pattern.permute.xlu0 2
  %428 = vperm.xlu0 %427, %v31
  %v429 = vpop.permute.xlu0 %428
  %431 = vset.pattern.permute.xlu0 2
  %432 = vperm.xlu0 %431, %v32
  %v433 = vpop.permute.xlu0 %432
  %435 = vset.pattern.permute.xlu0 2
  %436 = vperm.xlu0 %435, %v33
  %v437 = vpop.permute.xlu0 %436
  %439 = vset.pattern.permute.xlu0 2
  %440 = vperm.xlu0 %439, %v34
  %v441 = vpop.permute.xlu0 %440
  %443 = vset.pattern.permute.xlu0 2
  %444 = vperm.xlu0 %443, %v35
  %v445 = vpop.permute.xlu0 %444
  %v447 = vlaneseq
  %v448 = vshrl.u32 %v447, 7
  %v449 = vsub.s32 0, %v448
  %v450 = vrot.slane %v346, %v449
  %v451 = vmul.f32 %v349, %v450
  %v452 = vmul.f32 %v353, %v450
  %v453 = vmul.f32 %v357, %v450
  %v454 = vmul.f32 %v361, %v450
  %v455 = vmul.f32 %v365, %v450
  %v456 = vmul.f32 %v369, %v450
  %v457 = vmul.f32 %v373, %v450
  %v458 = vmul.f32 %v377, %v450
  %v459 = vmul.f32 %v381, %v450
  %v460 = vmul.f32 %v385, %v450
  %v461 = vmul.f32 %v389, %v450
  %v462 = vmul.f32 %v393, %v450
  %v463 = vmul.f32 %v397, %v450
  %v464 = vmul.f32 %v401, %v450
  %v465 = vmul.f32 %v405, %v450
  %v466 = vmul.f32 %v409, %v450
  %v467 = vmul.f32 %v413, %v450
  %v468 = vmul.f32 %v417, %v450
  %v469 = vmul.f32 %v421, %v450
  %v470 = vmul.f32 %v425, %v450
  %v471 = vmul.f32 %v429, %v450
  %v472 = vmul.f32 %v433, %v450
  %v473 = vmul.f32 %v437, %v450
  %v474 = vmul.f32 %v441, %v450
  %v475 = vmul.f32 %v445, %v450
  %v476 = vadd.f32 %v321, %v451
  %v477 = vadd.f32 %v322, %v452
  %v478 = vadd.f32 %v323, %v453
  %v479 = vadd.f32 %v324, %v454
  %v480 = vadd.f32 %v325, %v455
  %v481 = vadd.f32 %v326, %v456
  %v482 = vadd.f32 %v327, %v457
  %v483 = vadd.f32 %v328, %v458
  %v484 = vadd.f32 %v329, %v459
  %v485 = vadd.f32 %v330, %v460
  %v486 = vadd.f32 %v331, %v461
  %v487 = vadd.f32 %v332, %v462
  %v488 = vadd.f32 %v333, %v463
  %v489 = vadd.f32 %v334, %v464
  %v490 = vadd.f32 %v335, %v465
  %v491 = vadd.f32 %v336, %v466
  %v492 = vadd.f32 %v337, %v467
  %v493 = vadd.f32 %v338, %v468
  %v494 = vadd.f32 %v339, %v469
  %v495 = vadd.f32 %v340, %v470
  %v496 = vadd.f32 %v341, %v471
  %v497 = vadd.f32 %v342, %v472
  %v498 = vadd.f32 %v343, %v473
  %v499 = vadd.f32 %v344, %v474
  %v500 = vadd.f32 %v345, %v475
  %v501 = vld [vmem:[%s1 + $0x8] sm:$0x1]
  %v502 = vlaneseq
  %v503 = vshrl.u32 %v502, 7
  %v504 = vsub.s32 0, %v503
  %v505 = vrot.slane %v501, %v504
  %v506 = vadd.f32 %v476, %v505
  %v507 = vadd.f32 %v477, %v505
  %v508 = vadd.f32 %v478, %v505
  %v509 = vadd.f32 %v479, %v505
  %v510 = vadd.f32 %v480, %v505
  %v511 = vadd.f32 %v481, %v505
  %v512 = vadd.f32 %v482, %v505
  %v513 = vadd.f32 %v483, %v505
  %v514 = vadd.f32 %v484, %v505
  %v515 = vadd.f32 %v485, %v505
  %v516 = vadd.f32 %v486, %v505
  %v517 = vadd.f32 %v487, %v505
  %v518 = vadd.f32 %v488, %v505
  %v519 = vadd.f32 %v489, %v505
  %v520 = vadd.f32 %v490, %v505
  %v521 = vadd.f32 %v491, %v505
  %v522 = vadd.f32 %v492, %v505
  %v523 = vadd.f32 %v493, %v505
  %v524 = vadd.f32 %v494, %v505
  %v525 = vadd.f32 %v495, %v505
  %v526 = vadd.f32 %v496, %v505
  %v527 = vadd.f32 %v497, %v505
  %v528 = vadd.f32 %v498, %v505
  %v529 = vadd.f32 %v499, %v505
  %v530 = vadd.f32 %v500, %v505
  %v531 = vmax.f32 %v506, 0.0
  %v532 = vmax.f32 %v507, 0.0
  %v533 = vmax.f32 %v508, 0.0
  %v534 = vmax.f32 %v509, 0.0
  %v535 = vmax.f32 %v510, 0.0
  %v536 = vmax.f32 %v511, 0.0
  %v537 = vmax.f32 %v512, 0.0
  %v538 = vmax.f32 %v513, 0.0
  %v539 = vmax.f32 %v514, 0.0
  %v540 = vmax.f32 %v515, 0.0
  %v541 = vmax.f32 %v516, 0.0
  %v542 = vmax.f32 %v517, 0.0
  %v543 = vmax.f32 %v518, 0.0
  %v544 = vmax.f32 %v519, 0.0
  %v545 = vmax.f32 %v520, 0.0
  %v546 = vmax.f32 %v521, 0.0
  %v547 = vmax.f32 %v522, 0.0
  %v548 = vmax.f32 %v523, 0.0
  %v549 = vmax.f32 %v524, 0.0
  %v550 = vmax.f32 %v525, 0.0
  %v551 = vmax.f32 %v526, 0.0
  %v552 = vmax.f32 %v527, 0.0
  %v553 = vmax.f32 %v528, 0.0
  %v554 = vmax.f32 %v529, 0.0
  %v555 = vmax.f32 %v530, 0.0
  %v556 = vld [vmem:[%s1 + $0x10] sm:$0xff]
  %v557 = vld [vmem:[%s1 + $0x18] sm:$0xff]
  %v558 = vld [vmem:[%s1 + $0x20] sm:$0xff]
  %v559 = vld [vmem:[%s1 + $0x28] sm:$0xff]
  %v560 = vld [vmem:[%s1 + $0x30] sm:$0xff]
  %v561 = vld [vmem:[%s1 + $0x38] sm:$0xff]
  %v562 = vld [vmem:[%s1 + $0x40] sm:$0xff]
  %v563 = vld [vmem:[%s1 + $0x48] sm:$0xff]
  %v564 = vld [vmem:[%s1 + $0x50] sm:$0xff]
  %v565 = vld [vmem:[%s1 + $0x58] sm:$0xff]
  %v566 = vld [vmem:[%s1 + $0x60] sm:$0xff]
  %v567 = vld [vmem:[%s1 + $0x68] sm:$0xff]
  %v568 = vld [vmem:[%s1 + $0x70] sm:$0xff]
  %v569 = vld [vmem:[%s1 + $0x78] sm:$0xff]
  %v570 = vld [vmem:[%s1 + $0x80] sm:$0xff]
  %v571 = vld [vmem:[%s1 + $0x88] sm:$0xff]
  %572 = vmatprep.subr.mxu0 0.0
  %v573 = vand.u32 %v556, 4294901760
  %574 = vmatpush1.msra.mxu0 %v573
  %575 = vmatprep.subr.mxu0 0.0
  %v576 = vand.u32 %v557, 4294901760
  %577 = vmatpush1.msra.mxu0 %v576
  %578 = vmatprep.subr.mxu0 0.0
  %v579 = vand.u32 %v558, 4294901760
  %580 = vmatpush1.msra.mxu0 %v579
  %581 = vmatprep.subr.mxu0 0.0
  %v582 = vand.u32 %v559, 4294901760
  %583 = vmatpush1.msra.mxu0 %v582
  %584 = vmatprep.subr.mxu0 0.0
  %v585 = vand.u32 %v560, 4294901760
  %586 = vmatpush1.msra.mxu0 %v585
  %587 = vmatprep.subr.mxu0 0.0
  %v588 = vand.u32 %v561, 4294901760
  %589 = vmatpush1.msra.mxu0 %v588
  %590 = vmatprep.subr.mxu0 0.0
  %v591 = vand.u32 %v562, 4294901760
  %592 = vmatpush1.msra.mxu0 %v591
  %593 = vmatprep.subr.mxu0 0.0
  %v594 = vand.u32 %v563, 4294901760
  %595 = vmatpush1.msra.mxu0 %v594
  %596 = vmatprep.subr.mxu0 0.0
  %v597 = vand.u32 %v564, 4294901760
  %598 = vmatpush1.msra.mxu0 %v597
  %599 = vmatprep.subr.mxu0 0.0
  %v600 = vand.u32 %v565, 4294901760
  %601 = vmatpush1.msra.mxu0 %v600
  %602 = vmatprep.subr.mxu0 0.0
  %v603 = vand.u32 %v566, 4294901760
  %604 = vmatpush1.msra.mxu0 %v603
  %605 = vmatprep.subr.mxu0 0.0
  %v606 = vand.u32 %v567, 4294901760
  %607 = vmatpush1.msra.mxu0 %v606
  %608 = vmatprep.subr.mxu0 0.0
  %v609 = vand.u32 %v568, 4294901760
  %610 = vmatpush1.msra.mxu0 %v609
  %611 = vmatprep.subr.mxu0 0.0
  %v612 = vand.u32 %v569, 4294901760
  %613 = vmatpush1.msra.mxu0 %v612
  %614 = vmatprep.subr.mxu0 0.0
  %v615 = vand.u32 %v570, 4294901760
  %616 = vmatpush1.msra.mxu0 %v615
  %617 = vmatprep.subr.mxu0 0.0
  %v618 = vand.u32 %v571, 4294901760
  %619 = vmatpush1.msra.mxu0 %v618
  %620 = vmatprep.subr.mxu0 0.0
  %621 = vmatpush1.msra.mxu0 0.0
  %622 = vmatprep.subr.mxu0 0.0
  %623 = vmatpush1.msra.mxu0 0.0
  %624 = vmatprep.subr.mxu0 0.0
  %625 = vmatpush1.msra.mxu0 0.0
  %626 = vmatprep.subr.mxu0 0.0
  %627 = vmatpush1.msra.mxu0 0.0
  %628 = vmatprep.subr.mxu0 0.0
  %629 = vmatpush1.msra.mxu0 0.0
  %630 = vmatprep.subr.mxu0 0.0
  %631 = vmatpush1.msra.mxu0 0.0
  %632 = vmatprep.subr.mxu0 0.0
  %633 = vmatpush1.msra.mxu0 0.0
  %634 = vmatprep.subr.mxu0 0.0
  %635 = vmatpush1.msra.mxu0 0.0
  %636 = vmatprep.subr.mxu0 0.0
  %637 = vmatpush1.msra.mxu0 0.0
  %638 = vmatprep.subr.mxu0 0.0
  %639 = vmatpush1.msra.mxu0 0.0
  %640 = vmatprep.subr.mxu0 0.0
  %641 = vmatpush1.msra.mxu0 0.0
  %642 = vmatprep.subr.mxu0 0.0
  %643 = vmatpush1.msra.mxu0 0.0
  %644 = vmatprep.subr.mxu0 0.0
  %645 = vmatpush1.msra.mxu0 0.0
  %646 = vmatprep.subr.mxu0 0.0
  %647 = vmatpush1.msra.mxu0 0.0
  %648 = vmatprep.subr.mxu0 0.0
  %649 = vmatpush1.msra.mxu0 0.0
  %650 = vmatprep.subr.mxu0 0.0
  %651 = vmatpush1.msra.mxu0 0.0
  %652 = vmatprep.mubr.f32.mxu0 0.0
  %v653 = vand.u32 %v531, 4294901760
  %v654 = vsub.f32 %v531, %v653
  %v655 = vand.u32 %v654, 4294901760
  %v656 = vsub.f32 %v654, %v655
  %v657 = vand.u32 %v656, 4294901760
  %658 = vmatmul.mubr.f32.gmra.mrb[0].mxu0 %v657
  %v659 = vpop.f32.mrb[0].mxu0
  %v660 = vadd.f32 0.0, %v659
  %v661 = vpop.f32.mrb[0].mxu0
  %662 = vmatprep.mubr.f32.mxu0 0.0
  %v663 = vand.u32 %v532, 4294901760
  %v664 = vsub.f32 %v532, %v663
  %v665 = vand.u32 %v664, 4294901760
  %v666 = vsub.f32 %v664, %v665
  %v667 = vand.u32 %v666, 4294901760
  %668 = vmatmul.mubr.f32.gmra.mrb[0].mxu0 %v667
  %v669 = vpop.f32.mrb[0].mxu0
  %v670 = vadd.f32 0.0, %v669
  %v671 = vpop.f32.mrb[0].mxu0
  %672 = vmatprep.mubr.f32.mxu0 0.0
  %v673 = vand.u32 %v533, 4294901760
  %v674 = vsub.f32 %v533, %v673
  %v675 = vand.u32 %v674, 4294901760
  %v676 = vsub.f32 %v674, %v675
  %v677 = vand.u32 %v676, 4294901760
  %678 = vmatmul.mubr.f32.gmra.mrb[0].mxu0 %v677
  %v679 = vpop.f32.mrb[0].mxu0
  %v680 = vadd.f32 0.0, %v679
  %v681 = vpop.f32.mrb[0].mxu0
  %682 = vmatprep.mubr.f32.mxu0 0.0
  %v683 = vand.u32 %v534, 4294901760
  %v684 = vsub.f32 %v534, %v683
  %v685 = vand.u32 %v684, 4294901760
  %v686 = vsub.f32 %v684, %v685
  %v687 = vand.u32 %v686, 4294901760
  %688 = vmatmul.mubr.f32.gmra.mrb[0].mxu0 %v687
  %v689 = vpop.f32.mrb[0].mxu0
  %v690 = vadd.f32 0.0, %v689
  %v691 = vpop.f32.mrb[0].mxu0
  %692 = vmatprep.mubr.f32.mxu0 0.0
  %v693 = vand.u32 %v535, 4294901760
  %v694 = vsub.f32 %v535, %v693
  %v695 = vand.u32 %v694, 4294901760
  %v696 = vsub.f32 %v694, %v695
  %v697 = vand.u32 %v696, 4294901760
  %698 = vmatmul.mubr.f32.gmra.mrb[0].mxu0 %v697
  %v699 = vpop.f32.mrb[0].mxu0
  %v700 = vadd.f32 0.0, %v699
  %v701 = vpop.f32.mrb[0].mxu0
  %702 = vmatprep.mubr.f32.mxu0 0.0
  %v703 = vand.u32 %v536, 4294901760
  %v704 = vsub.f32 %v536, %v703
  %v705 = vand.u32 %v704, 4294901760
  %v706 = vsub.f32 %v704, %v705
  %v707 = vand.u32 %v706, 4294901760
  %708 = vmatmul.mubr.f32.gmra.mrb[0].mxu0 %v707
  %v709 = vpop.f32.mrb[0].mxu0
  %v710 = vadd.f32 0.0, %v709
  %v711 = vpop.f32.mrb[0].mxu0
  %712 = vmatprep.mubr.f32.mxu0 0.0
  %v713 = vand.u32 %v537, 4294901760
  %v714 = vsub.f32 %v537, %v713
  %v715 = vand.u32 %v714, 4294901760
  %v716 = vsub.f32 %v714, %v715
  %v717 = vand.u32 %v716, 4294901760
  %718 = vmatmul.mubr.f32.gmra.mrb[0].mxu0 %v717
  %v719 = vpop.f32.mrb[0].mxu0
  %v720 = vadd.f32 0.0, %v719
  %v721 = vpop.f32.mrb[0].mxu0
  %722 = vmatprep.mubr.f32.mxu0 0.0
  %v723 = vand.u32 %v538, 4294901760
  %v724 = vsub.f32 %v538, %v723
  %v725 = vand.u32 %v724, 4294901760
  %v726 = vsub.f32 %v724, %v725
  %v727 = vand.u32 %v726, 4294901760
  %728 = vmatmul.mubr.f32.gmra.mrb[0].mxu0 %v727
  %v729 = vpop.f32.mrb[0].mxu0
  %v730 = vadd.f32 0.0, %v729
  %v731 = vpop.f32.mrb[0].mxu0
  %732 = vmatprep.mubr.f32.mxu0 0.0
  %v733 = vand.u32 %v539, 4294901760
  %v734 = vsub.f32 %v539, %v733
  %v735 = vand.u32 %v734, 4294901760
  %v736 = vsub.f32 %v734, %v735
  %v737 = vand.u32 %v736, 4294901760
  %738 = vmatmul.mubr.f32.gmra.mrb[0].mxu0 %v737
  %v739 = vpop.f32.mrb[0].mxu0
  %v740 = vadd.f32 0.0, %v739
  %v741 = vpop.f32.mrb[0].mxu0
  %742 = vmatprep.mubr.f32.mxu0 0.0
  %v743 = vand.u32 %v540, 4294901760
  %v744 = vsub.f32 %v540, %v743
  %v745 = vand.u32 %v744, 4294901760
  %v746 = vsub.f32 %v744, %v745
  %v747 = vand.u32 %v746, 4294901760
  %748 = vmatmul.mubr.f32.gmra.mrb[0].mxu0 %v747
  %v749 = vpop.f32.mrb[0].mxu0
  %v750 = vadd.f32 0.0, %v749
  %v751 = vpop.f32.mrb[0].mxu0
  %752 = vmatprep.mubr.f32.mxu0 0.0
  %v753 = vand.u32 %v541, 4294901760
  %v754 = vsub.f32 %v541, %v753
  %v755 = vand.u32 %v754, 4294901760
  %v756 = vsub.f32 %v754, %v755
  %v757 = vand.u32 %v756, 4294901760
  %758 = vmatmul.mubr.f32.gmra.mrb[0].mxu0 %v757
  %v759 = vpop.f32.mrb[0].mxu0
  %v760 = vadd.f32 0.0, %v759
  %v761 = vpop.f32.mrb[0].mxu0
  %762 = vmatprep.mubr.f32.mxu0 0.0
  %v763 = vand.u32 %v542, 4294901760
  %v764 = vsub.f32 %v542, %v763
  %v765 = vand.u32 %v764, 4294901760
  %v766 = vsub.f32 %v764, %v765
  %v767 = vand.u32 %v766, 4294901760
  %768 = vmatmul.mubr.f32.gmra.mrb[0].mxu0 %v767
  %v769 = vpop.f32.mrb[0].mxu0
  %v770 = vadd.f32 0.0, %v769
  %v771 = vpop.f32.mrb[0].mxu0
  %772 = vmatprep.mubr.f32.mxu0 0.0
  %v773 = vand.u32 %v543, 4294901760
  %v774 = vsub.f32 %v543, %v773
  %v775 = vand.u32 %v774, 4294901760
  %v776 = vsub.f32 %v774, %v775
  %v777 = vand.u32 %v776, 4294901760
  %778 = vmatmul.mubr.f32.gmra.mrb[0].mxu0 %v777
  %v779 = vpop.f32.mrb[0].mxu0
  %v780 = vadd.f32 0.0, %v779
  %v781 = vpop.f32.mrb[0].mxu0
  %782 = vmatprep.mubr.f32.mxu0 0.0
  %v783 = vand.u32 %v544, 4294901760
  %v784 = vsub.f32 %v544, %v783
  %v785 = vand.u32 %v784, 4294901760
  %v786 = vsub.f32 %v784, %v785
  %v787 = vand.u32 %v786, 4294901760
  %788 = vmatmul.mubr.f32.gmra.mrb[0].mxu0 %v787
  %v789 = vpop.f32.mrb[0].mxu0
  %v790 = vadd.f32 0.0, %v789
  %v791 = vpop.f32.mrb[0].mxu0
  %792 = vmatprep.mubr.f32.mxu0 0.0
  %v793 = vand.u32 %v545, 4294901760
  %v794 = vsub.f32 %v545, %v793
  %v795 = vand.u32 %v794, 4294901760
  %v796 = vsub.f32 %v794, %v795
  %v797 = vand.u32 %v796, 4294901760
  %798 = vmatmul.mubr.f32.gmra.mrb[0].mxu0 %v797
  %v799 = vpop.f32.mrb[0].mxu0
  %v800 = vadd.f32 0.0, %v799
  %v801 = vpop.f32.mrb[0].mxu0
  %802 = vmatprep.mubr.f32.mxu0 0.0
  %v803 = vand.u32 %v546, 4294901760
  %v804 = vsub.f32 %v546, %v803
  %v805 = vand.u32 %v804, 4294901760
  %v806 = vsub.f32 %v804, %v805
  %v807 = vand.u32 %v806, 4294901760
  %808 = vmatmul.mubr.f32.gmra.mrb[0].mxu0 %v807
  %v809 = vpop.f32.mrb[0].mxu0
  %v810 = vadd.f32 0.0, %v809
  %v811 = vpop.f32.mrb[0].mxu0
  %812 = vmatprep.mubr.f32.mxu0 0.0
  %v813 = vand.u32 %v547, 4294901760
  %v814 = vsub.f32 %v547, %v813
  %v815 = vand.u32 %v814, 4294901760
  %v816 = vsub.f32 %v814, %v815
  %v817 = vand.u32 %v816, 4294901760
  %818 = vmatmul.mubr.f32.gmra.mrb[0].mxu0 %v817
  %v819 = vpop.f32.mrb[0].mxu0
  %v820 = vadd.f32 0.0, %v819
  %v821 = vpop.f32.mrb[0].mxu0
  %822 = vmatprep.mubr.f32.mxu0 0.0
  %v823 = vand.u32 %v548, 4294901760
  %v824 = vsub.f32 %v548, %v823
  %v825 = vand.u32 %v824, 4294901760
  %v826 = vsub.f32 %v824, %v825
  %v827 = vand.u32 %v826, 4294901760
  %828 = vmatmul.mubr.f32.gmra.mrb[0].mxu0 %v827
  %v829 = vpop.f32.mrb[0].mxu0
  %v830 = vadd.f32 0.0, %v829
  %v831 = vpop.f32.mrb[0].mxu0
  %832 = vmatprep.mubr.f32.mxu0 0.0
  %v833 = vand.u32 %v549, 4294901760
  %v834 = vsub.f32 %v549, %v833
  %v835 = vand.u32 %v834, 4294901760
  %v836 = vsub.f32 %v834, %v835
  %v837 = vand.u32 %v836, 4294901760
  %838 = vmatmul.mubr.f32.gmra.mrb[0].mxu0 %v837
  %v839 = vpop.f32.mrb[0].mxu0
  %v840 = vadd.f32 0.0, %v839
  %v841 = vpop.f32.mrb[0].mxu0
  %842 = vmatprep.mubr.f32.mxu0 0.0
  %v843 = vand.u32 %v550, 4294901760
  %v844 = vsub.f32 %v550, %v843
  %v845 = vand.u32 %v844, 4294901760
  %v846 = vsub.f32 %v844, %v845
  %v847 = vand.u32 %v846, 4294901760
  %848 = vmatmul.mubr.f32.gmra.mrb[0].mxu0 %v847
  %v849 = vpop.f32.mrb[0].mxu0
  %v850 = vadd.f32 0.0, %v849
  %v851 = vpop.f32.mrb[0].mxu0
  %852 = vmatprep.mubr.f32.mxu0 0.0
  %v853 = vand.u32 %v551, 4294901760
  %v854 = vsub.f32 %v551, %v853
  %v855 = vand.u32 %v854, 4294901760
  %v856 = vsub.f32 %v854, %v855
  %v857 = vand.u32 %v856, 4294901760
  %858 = vmatmul.mubr.f32.gmra.mrb[0].mxu0 %v857
  %v859 = vpop.f32.mrb[0].mxu0
  %v860 = vadd.f32 0.0, %v859
  %v861 = vpop.f32.mrb[0].mxu0
  %862 = vmatprep.mubr.f32.mxu0 0.0
  %v863 = vand.u32 %v552, 4294901760
  %v864 = vsub.f32 %v552, %v863
  %v865 = vand.u32 %v864, 4294901760
  %v866 = vsub.f32 %v864, %v865
  %v867 = vand.u32 %v866, 4294901760
  %868 = vmatmul.mubr.f32.gmra.mrb[0].mxu0 %v867
  %v869 = vpop.f32.mrb[0].mxu0
  %v870 = vadd.f32 0.0, %v869
  %v871 = vpop.f32.mrb[0].mxu0
  %872 = vmatprep.mubr.f32.mxu0 0.0
  %v873 = vand.u32 %v553, 4294901760
  %v874 = vsub.f32 %v553, %v873
  %v875 = vand.u32 %v874, 4294901760
  %v876 = vsub.f32 %v874, %v875
  %v877 = vand.u32 %v876, 4294901760
  %878 = vmatmul.mubr.f32.gmra.mrb[0].mxu0 %v877
  %v879 = vpop.f32.mrb[0].mxu0
  %v880 = vadd.f32 0.0, %v879
  %v881 = vpop.f32.mrb[0].mxu0
  %882 = vmatprep.mubr.f32.mxu0 0.0
  %v883 = vand.u32 %v554, 4294901760
  %v884 = vsub.f32 %v554, %v883
  %v885 = vand.u32 %v884, 4294901760
  %v886 = vsub.f32 %v884, %v885
  %v887 = vand.u32 %v886, 4294901760
  %888 = vmatmul.mubr.f32.gmra.mrb[0].mxu0 %v887
  %v889 = vpop.f32.mrb[0].mxu0
  %v890 = vadd.f32 0.0, %v889
  %v891 = vpop.f32.mrb[0].mxu0
  %892 = vmatprep.mubr.f32.mxu0 0.0
  %v893 = vand.u32 %v555, 4294901760
  %v894 = vsub.f32 %v555, %v893
  %v895 = vand.u32 %v894, 4294901760
  %v896 = vsub.f32 %v894, %v895
  %v897 = vand.u32 %v896, 4294901760
  %898 = vmatmul.mubr.f32.gmra.mrb[0].mxu0 %v897
  %v899 = vpop.f32.mrb[0].mxu0
  %v900 = vadd.f32 0.0, %v899
  %v901 = vpop.f32.mrb[0].mxu0
  %902 = vdwg.mxu0
  %903 = vmatprep.subr.mxu0 0.0
  %v904 = vand.u32 %v556, 4294901760
  %v905 = vsub.f32 %v556, %v904
  %v906 = vand.u32 %v905, 4294901760
  %v907 = vsub.f32 %v905, %v906
  %v908 = vand.u32 %v907, 4294901760
  %909 = vmatpush1.msra.mxu0 %v908
  %910 = vmatprep.subr.mxu0 0.0
  %v911 = vand.u32 %v557, 4294901760
  %v912 = vsub.f32 %v557, %v911
  %v913 = vand.u32 %v912, 4294901760
  %v914 = vsub.f32 %v912, %v913
  %v915 = vand.u32 %v914, 4294901760
  %916 = vmatpush1.msra.mxu0 %v915
  %917 = vmatprep.subr.mxu0 0.0
  %v918 = vand.u32 %v558, 4294901760
  %v919 = vsub.f32 %v558, %v918
  %v920 = vand.u32 %v919, 4294901760
  %v921 = vsub.f32 %v919, %v920
  %v922 = vand.u32 %v921, 4294901760
  %923 = vmatpush1.msra.mxu0 %v922
  %924 = vmatprep.subr.mxu0 0.0
  %v925 = vand.u32 %v559, 4294901760
  %v926 = vsub.f32 %v559, %v925
  %v927 = vand.u32 %v926, 4294901760
  %v928 = vsub.f32 %v926, %v927
  %v929 = vand.u32 %v928, 4294901760
  %930 = vmatpush1.msra.mxu0 %v929
  %931 = vmatprep.subr.mxu0 0.0
  %v932 = vand.u32 %v560, 4294901760
  %v933 = vsub.f32 %v560, %v932
  %v934 = vand.u32 %v933, 4294901760
  %v935 = vsub.f32 %v933, %v934
  %v936 = vand.u32 %v935, 4294901760
  %937 = vmatpush1.msra.mxu0 %v936
  %938 = vmatprep.subr.mxu0 0.0
  %v939 = vand.u32 %v561, 4294901760
  %v940 = vsub.f32 %v561, %v939
  %v941 = vand.u32 %v940, 4294901760
  %v942 = vsub.f32 %v940, %v941
  %v943 = vand.u32 %v942, 4294901760
  %944 = vmatpush1.msra.mxu0 %v943
  %945 = vmatprep.subr.mxu0 0.0
  %v946 = vand.u32 %v562, 4294901760
  %v947 = vsub.f32 %v562, %v946
  %v948 = vand.u32 %v947, 4294901760
  %v949 = vsub.f32 %v947, %v948
  %v950 = vand.u32 %v949, 4294901760
  %951 = vmatpush1.msra.mxu0 %v950
  %952 = vmatprep.subr.mxu0 0.0
  %v953 = vand.u32 %v563, 4294901760
  %v954 = vsub.f32 %v563, %v953
  %v955 = vand.u32 %v954, 4294901760
  %v956 = vsub.f32 %v954, %v955
  %v957 = vand.u32 %v956, 4294901760
  %958 = vmatpush1.msra.mxu0 %v957
  %959 = vmatprep.subr.mxu0 0.0
  %v960 = vand.u32 %v564, 4294901760
  %v961 = vsub.f32 %v564, %v960
  %v962 = vand.u32 %v961, 4294901760
  %v963 = vsub.f32 %v961, %v962
  %v964 = vand.u32 %v963, 4294901760
  %965 = vmatpush1.msra.mxu0 %v964
  %966 = vmatprep.subr.mxu0 0.0
  %v967 = vand.u32 %v565, 4294901760
  %v968 = vsub.f32 %v565, %v967
  %v969 = vand.u32 %v968, 4294901760
  %v970 = vsub.f32 %v968, %v969
  %v971 = vand.u32 %v970, 4294901760
  %972 = vmatpush1.msra.mxu0 %v971
  %973 = vmatprep.subr.mxu0 0.0
  %v974 = vand.u32 %v566, 4294901760
  %v975 = vsub.f32 %v566, %v974
  %v976 = vand.u32 %v975, 4294901760
  %v977 = vsub.f32 %v975, %v976
  %v978 = vand.u32 %v977, 4294901760
  %979 = vmatpush1.msra.mxu0 %v978
  %980 = vmatprep.subr.mxu0 0.0
  %v981 = vand.u32 %v567, 4294901760
  %v982 = vsub.f32 %v567, %v981
  %v983 = vand.u32 %v982, 4294901760
  %v984 = vsub.f32 %v982, %v983
  %v985 = vand.u32 %v984, 4294901760
  %986 = vmatpush1.msra.mxu0 %v985
  %987 = vmatprep.subr.mxu0 0.0
  %v988 = vand.u32 %v568, 4294901760
  %v989 = vsub.f32 %v568, %v988
  %v990 = vand.u32 %v989, 4294901760
  %v991 = vsub.f32 %v989, %v990
  %v992 = vand.u32 %v991, 4294901760
  %993 = vmatpush1.msra.mxu0 %v992
  %994 = vmatprep.subr.mxu0 0.0
  %v995 = vand.u32 %v569, 4294901760
  %v996 = vsub.f32 %v569, %v995
  %v997 = vand.u32 %v996, 4294901760
  %v998 = vsub.f32 %v996, %v997
  %v999 = vand.u32 %v998, 4294901760
  %1000 = vmatpush1.msra.mxu0 %v999
  %1001 = vmatprep.subr.mxu0 0.0
  %v1002 = vand.u32 %v570, 4294901760
  %v1003 = vsub.f32 %v570, %v1002
  %v1004 = vand.u32 %v1003, 4294901760
  %v1005 = vsub.f32 %v1003, %v1004
  %v1006 = vand.u32 %v1005, 4294901760
  %1007 = vmatpush1.msra.mxu0 %v1006
  %1008 = vmatprep.subr.mxu0 0.0
  %v1009 = vand.u32 %v571, 4294901760
  %v1010 = vsub.f32 %v571, %v1009
  %v1011 = vand.u32 %v1010, 4294901760
  %v1012 = vsub.f32 %v1010, %v1011
  %v1013 = vand.u32 %v1012, 4294901760
  %1014 = vmatpush1.msra.mxu0 %v1013
  %1015 = vmatprep.subr.mxu0 0.0
  %1016 = vmatpush1.msra.mxu0 0.0
  %1017 = vmatprep.subr.mxu0 0.0
  %1018 = vmatpush1.msra.mxu0 0.0
  %1019 = vmatprep.subr.mxu0 0.0
  %1020 = vmatpush1.msra.mxu0 0.0
  %1021 = vmatprep.subr.mxu0 0.0
  %1022 = vmatpush1.msra.mxu0 0.0
  %1023 = vmatprep.subr.mxu0 0.0
  %1024 = vmatpush1.msra.mxu0 0.0
  %1025 = vmatprep.subr.mxu0 0.0
  %1026 = vmatpush1.msra.mxu0 0.0
  %1027 = vmatprep.subr.mxu0 0.0
  %1028 = vmatpush1.msra.mxu0 0.0
  %1029 = vmatprep.subr.mxu0 0.0
  %1030 = vmatpush1.msra.mxu0 0.0
  %1031 = vmatprep.subr.mxu0 0.0
  %1032 = vmatpush1.msra.mxu0 0.0
  %1033 = vmatprep.subr.mxu0 0.0
  %1034 = vmatpush1.msra.mxu0 0.0
  %1035 = vmatprep.subr.mxu0 0.0
  %1036 = vmatpush1.msra.mxu0 0.0
  %1037 = vmatprep.subr.mxu0 0.0
  %1038 = vmatpush1.msra.mxu0 0.0
  %1039 = vmatprep.subr.mxu0 0.0
  %1040 = vmatpush1.msra.mxu0 0.0
  %1041 = vmatprep.subr.mxu0 0.0
  %1042 = vmatpush1.msra.mxu0 0.0
  %1043 = vmatprep.subr.mxu0 0.0
  %1044 = vmatpush1.msra.mxu0 0.0
  %1045 = vmatprep.subr.mxu0 0.0
  %1046 = vmatpush1.msra.mxu0 0.0
  %1047 = vmatprep.mubr.f32.mxu0 0.0
  %v1048 = vand.u32 %v531, 4294901760
  %1049 = vmatmul.mubr.f32.gmra.mrb[0].mxu0 %v1048
  %v1050 = vpop.f32.mrb[0].mxu0
  %v1051 = vadd.f32 %v660, %v1050
  %v1052 = vpop.f32.mrb[0].mxu0
  %1053 = vmatprep.mubr.f32.mxu0 0.0
  %v1054 = vand.u32 %v532, 4294901760
  %1055 = vmatmul.mubr.f32.gmra.mrb[0].mxu0 %v1054
  %v1056 = vpop.f32.mrb[0].mxu0
  %v1057 = vadd.f32 %v670, %v1056
  %v1058 = vpop.f32.mrb[0].mxu0
  %1059 = vmatprep.mubr.f32.mxu0 0.0
  %v1060 = vand.u32 %v533, 4294901760
  %1061 = vmatmul.mubr.f32.gmra.mrb[0].mxu0 %v1060
  %v1062 = vpop.f32.mrb[0].mxu0
  %v1063 = vadd.f32 %v680, %v1062
  %v1064 = vpop.f32.mrb[0].mxu0
  %1065 = vmatprep.mubr.f32.mxu0 0.0
  %v1066 = vand.u32 %v534, 4294901760
  %1067 = vmatmul.mubr.f32.gmra.mrb[0].mxu0 %v1066
  %v1068 = vpop.f32.mrb[0].mxu0
  %v1069 = vadd.f32 %v690, %v1068
  %v1070 = vpop.f32.mrb[0].mxu0
  %1071 = vmatprep.mubr.f32.mxu0 0.0
  %v1072 = vand.u32 %v535, 4294901760
  %1073 = vmatmul.mubr.f32.gmra.mrb[0].mxu0 %v1072
  %v1074 = vpop.f32.mrb[0].mxu0
  %v1075 = vadd.f32 %v700, %v1074
  %v1076 = vpop.f32.mrb[0].mxu0
  %1077 = vmatprep.mubr.f32.mxu0 0.0
  %v1078 = vand.u32 %v536, 4294901760
  %1079 = vmatmul.mubr.f32.gmra.mrb[0].mxu0 %v1078
  %v1080 = vpop.f32.mrb[0].mxu0
  %v1081 = vadd.f32 %v710, %v1080
  %v1082 = vpop.f32.mrb[0].mxu0
  %1083 = vmatprep.mubr.f32.mxu0 0.0
  %v1084 = vand.u32 %v537, 4294901760
  %1085 = vmatmul.mubr.f32.gmra.mrb[0].mxu0 %v1084
  %v1086 = vpop.f32.mrb[0].mxu0
  %v1087 = vadd.f32 %v720, %v1086
  %v1088 = vpop.f32.mrb[0].mxu0
  %1089 = vmatprep.mubr.f32.mxu0 0.0
  %v1090 = vand.u32 %v538, 4294901760
  %1091 = vmatmul.mubr.f32.gmra.mrb[0].mxu0 %v1090
  %v1092 = vpop.f32.mrb[0].mxu0
  %v1093 = vadd.f32 %v730, %v1092
  %v1094 = vpop.f32.mrb[0].mxu0
  %1095 = vmatprep.mubr.f32.mxu0 0.0
  %v1096 = vand.u32 %v539, 4294901760
  %1097 = vmatmul.mubr.f32.gmra.mrb[0].mxu0 %v1096
  %v1098 = vpop.f32.mrb[0].mxu0
  %v1099 = vadd.f32 %v740, %v1098
  %v1100 = vpop.f32.mrb[0].mxu0
  %1101 = vmatprep.mubr.f32.mxu0 0.0
  %v1102 = vand.u32 %v540, 4294901760
  %1103 = vmatmul.mubr.f32.gmra.mrb[0].mxu0 %v1102
  %v1104 = vpop.f32.mrb[0].mxu0
  %v1105 = vadd.f32 %v750, %v1104
  %v1106 = vpop.f32.mrb[0].mxu0
  %1107 = vmatprep.mubr.f32.mxu0 0.0
  %v1108 = vand.u32 %v541, 4294901760
  %1109 = vmatmul.mubr.f32.gmra.mrb[0].mxu0 %v1108
  %v1110 = vpop.f32.mrb[0].mxu0
  %v1111 = vadd.f32 %v760, %v1110
  %v1112 = vpop.f32.mrb[0].mxu0
  %1113 = vmatprep.mubr.f32.mxu0 0.0
  %v1114 = vand.u32 %v542, 4294901760
  %1115 = vmatmul.mubr.f32.gmra.mrb[0].mxu0 %v1114
  %v1116 = vpop.f32.mrb[0].mxu0
  %v1117 = vadd.f32 %v770, %v1116
  %v1118 = vpop.f32.mrb[0].mxu0
  %1119 = vmatprep.mubr.f32.mxu0 0.0
  %v1120 = vand.u32 %v543, 4294901760
  %1121 = vmatmul.mubr.f32.gmra.mrb[0].mxu0 %v1120
  %v1122 = vpop.f32.mrb[0].mxu0
  %v1123 = vadd.f32 %v780, %v1122
  %v1124 = vpop.f32.mrb[0].mxu0
  %1125 = vmatprep.mubr.f32.mxu0 0.0
  %v1126 = vand.u32 %v544, 4294901760
  %1127 = vmatmul.mubr.f32.gmra.mrb[0].mxu0 %v1126
  %v1128 = vpop.f32.mrb[0].mxu0
  %v1129 = vadd.f32 %v790, %v1128
  %v1130 = vpop.f32.mrb[0].mxu0
  %1131 = vmatprep.mubr.f32.mxu0 0.0
  %v1132 = vand.u32 %v545, 4294901760
  %1133 = vmatmul.mubr.f32.gmra.mrb[0].mxu0 %v1132
  %v1134 = vpop.f32.mrb[0].mxu0
  %v1135 = vadd.f32 %v800, %v1134
  %v1136 = vpop.f32.mrb[0].mxu0
  %1137 = vmatprep.mubr.f32.mxu0 0.0
  %v1138 = vand.u32 %v546, 4294901760
  %1139 = vmatmul.mubr.f32.gmra.mrb[0].mxu0 %v1138
  %v1140 = vpop.f32.mrb[0].mxu0
  %v1141 = vadd.f32 %v810, %v1140
  %v1142 = vpop.f32.mrb[0].mxu0
  %1143 = vmatprep.mubr.f32.mxu0 0.0
  %v1144 = vand.u32 %v547, 4294901760
  %1145 = vmatmul.mubr.f32.gmra.mrb[0].mxu0 %v1144
  %v1146 = vpop.f32.mrb[0].mxu0
  %v1147 = vadd.f32 %v820, %v1146
  %v1148 = vpop.f32.mrb[0].mxu0
  %1149 = vmatprep.mubr.f32.mxu0 0.0
  %v1150 = vand.u32 %v548, 4294901760
  %1151 = vmatmul.mubr.f32.gmra.mrb[0].mxu0 %v1150
  %v1152 = vpop.f32.mrb[0].mxu0
  %v1153 = vadd.f32 %v830, %v1152
  %v1154 = vpop.f32.mrb[0].mxu0
  %1155 = vmatprep.mubr.f32.mxu0 0.0
  %v1156 = vand.u32 %v549, 4294901760
  %1157 = vmatmul.mubr.f32.gmra.mrb[0].mxu0 %v1156
  %v1158 = vpop.f32.mrb[0].mxu0
  %v1159 = vadd.f32 %v840, %v1158
  %v1160 = vpop.f32.mrb[0].mxu0
  %1161 = vmatprep.mubr.f32.mxu0 0.0
  %v1162 = vand.u32 %v550, 4294901760
  %1163 = vmatmul.mubr.f32.gmra.mrb[0].mxu0 %v1162
  %v1164 = vpop.f32.mrb[0].mxu0
  %v1165 = vadd.f32 %v850, %v1164
  %v1166 = vpop.f32.mrb[0].mxu0
  %1167 = vmatprep.mubr.f32.mxu0 0.0
  %v1168 = vand.u32 %v551, 4294901760
  %1169 = vmatmul.mubr.f32.gmra.mrb[0].mxu0 %v1168
  %v1170 = vpop.f32.mrb[0].mxu0
  %v1171 = vadd.f32 %v860, %v1170
  %v1172 = vpop.f32.mrb[0].mxu0
  %1173 = vmatprep.mubr.f32.mxu0 0.0
  %v1174 = vand.u32 %v552, 4294901760
  %1175 = vmatmul.mubr.f32.gmra.mrb[0].mxu0 %v1174
  %v1176 = vpop.f32.mrb[0].mxu0
  %v1177 = vadd.f32 %v870, %v1176
  %v1178 = vpop.f32.mrb[0].mxu0
  %1179 = vmatprep.mubr.f32.mxu0 0.0
  %v1180 = vand.u32 %v553, 4294901760
  %1181 = vmatmul.mubr.f32.gmra.mrb[0].mxu0 %v1180
  %v1182 = vpop.f32.mrb[0].mxu0
  %v1183 = vadd.f32 %v880, %v1182
  %v1184 = vpop.f32.mrb[0].mxu0
  %1185 = vmatprep.mubr.f32.mxu0 0.0
  %v1186 = vand.u32 %v554, 4294901760
  %1187 = vmatmul.mubr.f32.gmra.mrb[0].mxu0 %v1186
  %v1188 = vpop.f32.mrb[0].mxu0
  %v1189 = vadd.f32 %v890, %v1188
  %v1190 = vpop.f32.mrb[0].mxu0
  %1191 = vmatprep.mubr.f32.mxu0 0.0
  %v1192 = vand.u32 %v555, 4294901760
  %1193 = vmatmul.mubr.f32.gmra.mrb[0].mxu0 %v1192
  %v1194 = vpop.f32.mrb[0].mxu0
  %v1195 = vadd.f32 %v900, %v1194
  %v1196 = vpop.f32.mrb[0].mxu0
  %1197 = vdwg.mxu0
  %1198 = vmatprep.subr.mxu0 0.0
  %v1199 = vand.u32 %v556, 4294901760
  %v1200 = vsub.f32 %v556, %v1199
  %1201 = vmatpush1.msra.mxu0 %v1200
  %1202 = vmatprep.subr.mxu0 0.0
  %v1203 = vand.u32 %v557, 4294901760
  %v1204 = vsub.f32 %v557, %v1203
  %1205 = vmatpush1.msra.mxu0 %v1204
  %1206 = vmatprep.subr.mxu0 0.0
  %v1207 = vand.u32 %v558, 4294901760
  %v1208 = vsub.f32 %v558, %v1207
  %1209 = vmatpush1.msra.mxu0 %v1208
  %1210 = vmatprep.subr.mxu0 0.0
  %v1211 = vand.u32 %v559, 4294901760
  %v1212 = vsub.f32 %v559, %v1211
  %1213 = vmatpush1.msra.mxu0 %v1212
  %1214 = vmatprep.subr.mxu0 0.0
  %v1215 = vand.u32 %v560, 4294901760
  %v1216 = vsub.f32 %v560, %v1215
  %1217 = vmatpush1.msra.mxu0 %v1216
  %1218 = vmatprep.subr.mxu0 0.0
  %v1219 = vand.u32 %v561, 4294901760
  %v1220 = vsub.f32 %v561, %v1219
  %1221 = vmatpush1.msra.mxu0 %v1220
  %1222 = vmatprep.subr.mxu0 0.0
  %v1223 = vand.u32 %v562, 4294901760
  %v1224 = vsub.f32 %v562, %v1223
  %1225 = vmatpush1.msra.mxu0 %v1224
  %1226 = vmatprep.subr.mxu0 0.0
  %v1227 = vand.u32 %v563, 4294901760
  %v1228 = vsub.f32 %v563, %v1227
  %1229 = vmatpush1.msra.mxu0 %v1228
  %1230 = vmatprep.subr.mxu0 0.0
  %v1231 = vand.u32 %v564, 4294901760
  %v1232 = vsub.f32 %v564, %v1231
  %1233 = vmatpush1.msra.mxu0 %v1232
  %1234 = vmatprep.subr.mxu0 0.0
  %v1235 = vand.u32 %v565, 4294901760
  %v1236 = vsub.f32 %v565, %v1235
  %1237 = vmatpush1.msra.mxu0 %v1236
  %1238 = vmatprep.subr.mxu0 0.0
  %v1239 = vand.u32 %v566, 4294901760
  %v1240 = vsub.f32 %v566, %v1239
  %1241 = vmatpush1.msra.mxu0 %v1240
  %1242 = vmatprep.subr.mxu0 0.0
  %v1243 = vand.u32 %v567, 4294901760
  %v1244 = vsub.f32 %v567, %v1243
  %1245 = vmatpush1.msra.mxu0 %v1244
  %1246 = vmatprep.subr.mxu0 0.0
  %v1247 = vand.u32 %v568, 4294901760
  %v1248 = vsub.f32 %v568, %v1247
  %1249 = vmatpush1.msra.mxu0 %v1248
  %1250 = vmatprep.subr.mxu0 0.0
  %v1251 = vand.u32 %v569, 4294901760
  %v1252 = vsub.f32 %v569, %v1251
  %1253 = vmatpush1.msra.mxu0 %v1252
  %1254 = vmatprep.subr.mxu0 0.0
  %v1255 = vand.u32 %v570, 4294901760
  %v1256 = vsub.f32 %v570, %v1255
  %1257 = vmatpush1.msra.mxu0 %v1256
  %1258 = vmatprep.subr.mxu0 0.0
  %v1259 = vand.u32 %v571, 4294901760
  %v1260 = vsub.f32 %v571, %v1259
  %1261 = vmatpush1.msra.mxu0 %v1260
  %1262 = vmatprep.subr.mxu0 0.0
  %1263 = vmatpush1.msra.mxu0 0.0
  %1264 = vmatprep.subr.mxu0 0.0
  %1265 = vmatpush1.msra.mxu0 0.0
  %1266 = vmatprep.subr.mxu0 0.0
  %1267 = vmatpush1.msra.mxu0 0.0
  %1268 = vmatprep.subr.mxu0 0.0
  %1269 = vmatpush1.msra.mxu0 0.0
  %1270 = vmatprep.subr.mxu0 0.0
  %1271 = vmatpush1.msra.mxu0 0.0
  %1272 = vmatprep.subr.mxu0 0.0
  %1273 = vmatpush1.msra.mxu0 0.0
  %1274 = vmatprep.subr.mxu0 0.0
  %1275 = vmatpush1.msra.mxu0 0.0
  %1276 = vmatprep.subr.mxu0 0.0
  %1277 = vmatpush1.msra.mxu0 0.0
  %1278 = vmatprep.subr.mxu0 0.0
  %1279 = vmatpush1.msra.mxu0 0.0
  %1280 = vmatprep.subr.mxu0 0.0
  %1281 = vmatpush1.msra.mxu0 0.0
  %1282 = vmatprep.subr.mxu0 0.0
  %1283 = vmatpush1.msra.mxu0 0.0
  %1284 = vmatprep.subr.mxu0 0.0
  %1285 = vmatpush1.msra.mxu0 0.0
  %1286 = vmatprep.subr.mxu0 0.0
  %1287 = vmatpush1.msra.mxu0 0.0
  %1288 = vmatprep.subr.mxu0 0.0
  %1289 = vmatpush1.msra.mxu0 0.0
  %1290 = vmatprep.subr.mxu0 0.0
  %1291 = vmatpush1.msra.mxu0 0.0
  %1292 = vmatprep.subr.mxu0 0.0
  %1293 = vmatpush1.msra.mxu0 0.0
  %1294 = vmatprep.mubr.f32.mxu0 0.0
  %v1295 = vand.u32 %v531, 4294901760
  %v1296 = vsub.f32 %v531, %v1295
  %1297 = vmatmul.mubr.f32.gmra.mrb[0].mxu0 %v1296
  %v1298 = vpop.f32.mrb[0].mxu0
  %v1299 = vadd.f32 %v1051, %v1298
  %v1300 = vpop.f32.mrb[0].mxu0
  %1301 = vmatprep.mubr.f32.mxu0 0.0
  %v1302 = vand.u32 %v532, 4294901760
  %v1303 = vsub.f32 %v532, %v1302
  %1304 = vmatmul.mubr.f32.gmra.mrb[0].mxu0 %v1303
  %v1305 = vpop.f32.mrb[0].mxu0
  %v1306 = vadd.f32 %v1057, %v1305
  %v1307 = vpop.f32.mrb[0].mxu0
  %1308 = vmatprep.mubr.f32.mxu0 0.0
  %v1309 = vand.u32 %v533, 4294901760
  %v1310 = vsub.f32 %v533, %v1309
  %1311 = vmatmul.mubr.f32.gmra.mrb[0].mxu0 %v1310
  %v1312 = vpop.f32.mrb[0].mxu0
  %v1313 = vadd.f32 %v1063, %v1312
  %v1314 = vpop.f32.mrb[0].mxu0
  %1315 = vmatprep.mubr.f32.mxu0 0.0
  %v1316 = vand.u32 %v534, 4294901760
  %v1317 = vsub.f32 %v534, %v1316
  %1318 = vmatmul.mubr.f32.gmra.mrb[0].mxu0 %v1317
  %v1319 = vpop.f32.mrb[0].mxu0
  %v1320 = vadd.f32 %v1069, %v1319
  %v1321 = vpop.f32.mrb[0].mxu0
  %1322 = vmatprep.mubr.f32.mxu0 0.0
  %v1323 = vand.u32 %v535, 4294901760
  %v1324 = vsub.f32 %v535, %v1323
  %1325 = vmatmul.mubr.f32.gmra.mrb[0].mxu0 %v1324
  %v1326 = vpop.f32.mrb[0].mxu0
  %v1327 = vadd.f32 %v1075, %v1326
  %v1328 = vpop.f32.mrb[0].mxu0
  %1329 = vmatprep.mubr.f32.mxu0 0.0
  %v1330 = vand.u32 %v536, 4294901760
  %v1331 = vsub.f32 %v536, %v1330
  %1332 = vmatmul.mubr.f32.gmra.mrb[0].mxu0 %v1331
  %v1333 = vpop.f32.mrb[0].mxu0
  %v1334 = vadd.f32 %v1081, %v1333
  %v1335 = vpop.f32.mrb[0].mxu0
  %1336 = vmatprep.mubr.f32.mxu0 0.0
  %v1337 = vand.u32 %v537, 4294901760
  %v1338 = vsub.f32 %v537, %v1337
  %1339 = vmatmul.mubr.f32.gmra.mrb[0].mxu0 %v1338
  %v1340 = vpop.f32.mrb[0].mxu0
  %v1341 = vadd.f32 %v1087, %v1340
  %v1342 = vpop.f32.mrb[0].mxu0
  %1343 = vmatprep.mubr.f32.mxu0 0.0
  %v1344 = vand.u32 %v538, 4294901760
  %v1345 = vsub.f32 %v538, %v1344
  %1346 = vmatmul.mubr.f32.gmra.mrb[0].mxu0 %v1345
  %v1347 = vpop.f32.mrb[0].mxu0
  %v1348 = vadd.f32 %v1093, %v1347
  %v1349 = vpop.f32.mrb[0].mxu0
  %1350 = vmatprep.mubr.f32.mxu0 0.0
  %v1351 = vand.u32 %v539, 4294901760
  %v1352 = vsub.f32 %v539, %v1351
  %1353 = vmatmul.mubr.f32.gmra.mrb[0].mxu0 %v1352
  %v1354 = vpop.f32.mrb[0].mxu0
  %v1355 = vadd.f32 %v1099, %v1354
  %v1356 = vpop.f32.mrb[0].mxu0
  %1357 = vmatprep.mubr.f32.mxu0 0.0
  %v1358 = vand.u32 %v540, 4294901760
  %v1359 = vsub.f32 %v540, %v1358
  %1360 = vmatmul.mubr.f32.gmra.mrb[0].mxu0 %v1359
  %v1361 = vpop.f32.mrb[0].mxu0
  %v1362 = vadd.f32 %v1105, %v1361
  %v1363 = vpop.f32.mrb[0].mxu0
  %1364 = vmatprep.mubr.f32.mxu0 0.0
  %v1365 = vand.u32 %v541, 4294901760
  %v1366 = vsub.f32 %v541, %v1365
  %1367 = vmatmul.mubr.f32.gmra.mrb[0].mxu0 %v1366
  %v1368 = vpop.f32.mrb[0].mxu0
  %v1369 = vadd.f32 %v1111, %v1368
  %v1370 = vpop.f32.mrb[0].mxu0
  %1371 = vmatprep.mubr.f32.mxu0 0.0
  %v1372 = vand.u32 %v542, 4294901760
  %v1373 = vsub.f32 %v542, %v1372
  %1374 = vmatmul.mubr.f32.gmra.mrb[0].mxu0 %v1373
  %v1375 = vpop.f32.mrb[0].mxu0
  %v1376 = vadd.f32 %v1117, %v1375
  %v1377 = vpop.f32.mrb[0].mxu0
  %1378 = vmatprep.mubr.f32.mxu0 0.0
  %v1379 = vand.u32 %v543, 4294901760
  %v1380 = vsub.f32 %v543, %v1379
  %1381 = vmatmul.mubr.f32.gmra.mrb[0].mxu0 %v1380
  %v1382 = vpop.f32.mrb[0].mxu0
  %v1383 = vadd.f32 %v1123, %v1382
  %v1384 = vpop.f32.mrb[0].mxu0
  %1385 = vmatprep.mubr.f32.mxu0 0.0
  %v1386 = vand.u32 %v544, 4294901760
  %v1387 = vsub.f32 %v544, %v1386
  %1388 = vmatmul.mubr.f32.gmra.mrb[0].mxu0 %v1387
  %v1389 = vpop.f32.mrb[0].mxu0
  %v1390 = vadd.f32 %v1129, %v1389
  %v1391 = vpop.f32.mrb[0].mxu0
  %1392 = vmatprep.mubr.f32.mxu0 0.0
  %v1393 = vand.u32 %v545, 4294901760
  %v1394 = vsub.f32 %v545, %v1393
  %1395 = vmatmul.mubr.f32.gmra.mrb[0].mxu0 %v1394
  %v1396 = vpop.f32.mrb[0].mxu0
  %v1397 = vadd.f32 %v1135, %v1396
  %v1398 = vpop.f32.mrb[0].mxu0
  %1399 = vmatprep.mubr.f32.mxu0 0.0
  %v1400 = vand.u32 %v546, 4294901760
  %v1401 = vsub.f32 %v546, %v1400
  %1402 = vmatmul.mubr.f32.gmra.mrb[0].mxu0 %v1401
  %v1403 = vpop.f32.mrb[0].mxu0
  %v1404 = vadd.f32 %v1141, %v1403
  %v1405 = vpop.f32.mrb[0].mxu0
  %1406 = vmatprep.mubr.f32.mxu0 0.0
  %v1407 = vand.u32 %v547, 4294901760
  %v1408 = vsub.f32 %v547, %v1407
  %1409 = vmatmul.mubr.f32.gmra.mrb[0].mxu0 %v1408
  %v1410 = vpop.f32.mrb[0].mxu0
  %v1411 = vadd.f32 %v1147, %v1410
  %v1412 = vpop.f32.mrb[0].mxu0
  %1413 = vmatprep.mubr.f32.mxu0 0.0
  %v1414 = vand.u32 %v548, 4294901760
  %v1415 = vsub.f32 %v548, %v1414
  %1416 = vmatmul.mubr.f32.gmra.mrb[0].mxu0 %v1415
  %v1417 = vpop.f32.mrb[0].mxu0
  %v1418 = vadd.f32 %v1153, %v1417
  %v1419 = vpop.f32.mrb[0].mxu0
  %1420 = vmatprep.mubr.f32.mxu0 0.0
  %v1421 = vand.u32 %v549, 4294901760
  %v1422 = vsub.f32 %v549, %v1421
  %1423 = vmatmul.mubr.f32.gmra.mrb[0].mxu0 %v1422
  %v1424 = vpop.f32.mrb[0].mxu0
  %v1425 = vadd.f32 %v1159, %v1424
  %v1426 = vpop.f32.mrb[0].mxu0
  %1427 = vmatprep.mubr.f32.mxu0 0.0
  %v1428 = vand.u32 %v550, 4294901760
  %v1429 = vsub.f32 %v550, %v1428
  %1430 = vmatmul.mubr.f32.gmra.mrb[0].mxu0 %v1429
  %v1431 = vpop.f32.mrb[0].mxu0
  %v1432 = vadd.f32 %v1165, %v1431
  %v1433 = vpop.f32.mrb[0].mxu0
  %1434 = vmatprep.mubr.f32.mxu0 0.0
  %v1435 = vand.u32 %v551, 4294901760
  %v1436 = vsub.f32 %v551, %v1435
  %1437 = vmatmul.mubr.f32.gmra.mrb[0].mxu0 %v1436
  %v1438 = vpop.f32.mrb[0].mxu0
  %v1439 = vadd.f32 %v1171, %v1438
  %v1440 = vpop.f32.mrb[0].mxu0
  %1441 = vmatprep.mubr.f32.mxu0 0.0
  %v1442 = vand.u32 %v552, 4294901760
  %v1443 = vsub.f32 %v552, %v1442
  %1444 = vmatmul.mubr.f32.gmra.mrb[0].mxu0 %v1443
  %v1445 = vpop.f32.mrb[0].mxu0
  %v1446 = vadd.f32 %v1177, %v1445
  %v1447 = vpop.f32.mrb[0].mxu0
  %1448 = vmatprep.mubr.f32.mxu0 0.0
  %v1449 = vand.u32 %v553, 4294901760
  %v1450 = vsub.f32 %v553, %v1449
  %1451 = vmatmul.mubr.f32.gmra.mrb[0].mxu0 %v1450
  %v1452 = vpop.f32.mrb[0].mxu0
  %v1453 = vadd.f32 %v1183, %v1452
  %v1454 = vpop.f32.mrb[0].mxu0
  %1455 = vmatprep.mubr.f32.mxu0 0.0
  %v1456 = vand.u32 %v554, 4294901760
  %v1457 = vsub.f32 %v554, %v1456
  %1458 = vmatmul.mubr.f32.gmra.mrb[0].mxu0 %v1457
  %v1459 = vpop.f32.mrb[0].mxu0
  %v1460 = vadd.f32 %v1189, %v1459
  %v1461 = vpop.f32.mrb[0].mxu0
  %1462 = vmatprep.mubr.f32.mxu0 0.0
  %v1463 = vand.u32 %v555, 4294901760
  %v1464 = vsub.f32 %v555, %v1463
  %1465 = vmatmul.mubr.f32.gmra.mrb[0].mxu0 %v1464
  %v1466 = vpop.f32.mrb[0].mxu0
  %v1467 = vadd.f32 %v1195, %v1466
  %v1468 = vpop.f32.mrb[0].mxu0
  %1469 = vdwg.mxu0
  %1470 = vmatprep.subr.mxu0 0.0
  %v1471 = vand.u32 %v556, 4294901760
  %1472 = vmatpush1.msra.mxu0 %v1471
  %1473 = vmatprep.subr.mxu0 0.0
  %v1474 = vand.u32 %v557, 4294901760
  %1475 = vmatpush1.msra.mxu0 %v1474
  %1476 = vmatprep.subr.mxu0 0.0
  %v1477 = vand.u32 %v558, 4294901760
  %1478 = vmatpush1.msra.mxu0 %v1477
  %1479 = vmatprep.subr.mxu0 0.0
  %v1480 = vand.u32 %v559, 4294901760
  %1481 = vmatpush1.msra.mxu0 %v1480
  %1482 = vmatprep.subr.mxu0 0.0
  %v1483 = vand.u32 %v560, 4294901760
  %1484 = vmatpush1.msra.mxu0 %v1483
  %1485 = vmatprep.subr.mxu0 0.0
  %v1486 = vand.u32 %v561, 4294901760
  %1487 = vmatpush1.msra.mxu0 %v1486
  %1488 = vmatprep.subr.mxu0 0.0
  %v1489 = vand.u32 %v562, 4294901760
  %1490 = vmatpush1.msra.mxu0 %v1489
  %1491 = vmatprep.subr.mxu0 0.0
  %v1492 = vand.u32 %v563, 4294901760
  %1493 = vmatpush1.msra.mxu0 %v1492
  %1494 = vmatprep.subr.mxu0 0.0
  %v1495 = vand.u32 %v564, 4294901760
  %1496 = vmatpush1.msra.mxu0 %v1495
  %1497 = vmatprep.subr.mxu0 0.0
  %v1498 = vand.u32 %v565, 4294901760
  %1499 = vmatpush1.msra.mxu0 %v1498
  %1500 = vmatprep.subr.mxu0 0.0
  %v1501 = vand.u32 %v566, 4294901760
  %1502 = vmatpush1.msra.mxu0 %v1501
  %1503 = vmatprep.subr.mxu0 0.0
  %v1504 = vand.u32 %v567, 4294901760
  %1505 = vmatpush1.msra.mxu0 %v1504
  %1506 = vmatprep.subr.mxu0 0.0
  %v1507 = vand.u32 %v568, 4294901760
  %1508 = vmatpush1.msra.mxu0 %v1507
  %1509 = vmatprep.subr.mxu0 0.0
  %v1510 = vand.u32 %v569, 4294901760
  %1511 = vmatpush1.msra.mxu0 %v1510
  %1512 = vmatprep.subr.mxu0 0.0
  %v1513 = vand.u32 %v570, 4294901760
  %1514 = vmatpush1.msra.mxu0 %v1513
  %1515 = vmatprep.subr.mxu0 0.0
  %v1516 = vand.u32 %v571, 4294901760
  %1517 = vmatpush1.msra.mxu0 %v1516
  %1518 = vmatprep.subr.mxu0 0.0
  %1519 = vmatpush1.msra.mxu0 0.0
  %1520 = vmatprep.subr.mxu0 0.0
  %1521 = vmatpush1.msra.mxu0 0.0
  %1522 = vmatprep.subr.mxu0 0.0
  %1523 = vmatpush1.msra.mxu0 0.0
  %1524 = vmatprep.subr.mxu0 0.0
  %1525 = vmatpush1.msra.mxu0 0.0
  %1526 = vmatprep.subr.mxu0 0.0
  %1527 = vmatpush1.msra.mxu0 0.0
  %1528 = vmatprep.subr.mxu0 0.0
  %1529 = vmatpush1.msra.mxu0 0.0
  %1530 = vmatprep.subr.mxu0 0.0
  %1531 = vmatpush1.msra.mxu0 0.0
  %1532 = vmatprep.subr.mxu0 0.0
  %1533 = vmatpush1.msra.mxu0 0.0
  %1534 = vmatprep.subr.mxu0 0.0
  %1535 = vmatpush1.msra.mxu0 0.0
  %1536 = vmatprep.subr.mxu0 0.0
  %1537 = vmatpush1.msra.mxu0 0.0
  %1538 = vmatprep.subr.mxu0 0.0
  %1539 = vmatpush1.msra.mxu0 0.0
  %1540 = vmatprep.subr.mxu0 0.0
  %1541 = vmatpush1.msra.mxu0 0.0
  %1542 = vmatprep.subr.mxu0 0.0
  %1543 = vmatpush1.msra.mxu0 0.0
  %1544 = vmatprep.subr.mxu0 0.0
  %1545 = vmatpush1.msra.mxu0 0.0
  %1546 = vmatprep.subr.mxu0 0.0
  %1547 = vmatpush1.msra.mxu0 0.0
  %1548 = vmatprep.subr.mxu0 0.0
  %1549 = vmatpush1.msra.mxu0 0.0
  %1550 = vmatprep.mubr.f32.mxu0 0.0
  %v1551 = vand.u32 %v531, 4294901760
  %v1552 = vsub.f32 %v531, %v1551
  %v1553 = vand.u32 %v1552, 4294901760
  %1554 = vmatmul.mubr.f32.gmra.mrb[0].mxu0 %v1553
  %v1555 = vpop.f32.mrb[0].mxu0
  %v1556 = vadd.f32 %v1299, %v1555
  %v1557 = vpop.f32.mrb[0].mxu0
  %1558 = vmatprep.mubr.f32.mxu0 0.0
  %v1559 = vand.u32 %v532, 4294901760
  %v1560 = vsub.f32 %v532, %v1559
  %v1561 = vand.u32 %v1560, 4294901760
  %1562 = vmatmul.mubr.f32.gmra.mrb[0].mxu0 %v1561
  %v1563 = vpop.f32.mrb[0].mxu0
  %v1564 = vadd.f32 %v1306, %v1563
  %v1565 = vpop.f32.mrb[0].mxu0
  %1566 = vmatprep.mubr.f32.mxu0 0.0
  %v1567 = vand.u32 %v533, 4294901760
  %v1568 = vsub.f32 %v533, %v1567
  %v1569 = vand.u32 %v1568, 4294901760
  %1570 = vmatmul.mubr.f32.gmra.mrb[0].mxu0 %v1569
  %v1571 = vpop.f32.mrb[0].mxu0
  %v1572 = vadd.f32 %v1313, %v1571
  %v1573 = vpop.f32.mrb[0].mxu0
  %1574 = vmatprep.mubr.f32.mxu0 0.0
  %v1575 = vand.u32 %v534, 4294901760
  %v1576 = vsub.f32 %v534, %v1575
  %v1577 = vand.u32 %v1576, 4294901760
  %1578 = vmatmul.mubr.f32.gmra.mrb[0].mxu0 %v1577
  %v1579 = vpop.f32.mrb[0].mxu0
  %v1580 = vadd.f32 %v1320, %v1579
  %v1581 = vpop.f32.mrb[0].mxu0
  %1582 = vmatprep.mubr.f32.mxu0 0.0
  %v1583 = vand.u32 %v535, 4294901760
  %v1584 = vsub.f32 %v535, %v1583
  %v1585 = vand.u32 %v1584, 4294901760
  %1586 = vmatmul.mubr.f32.gmra.mrb[0].mxu0 %v1585
  %v1587 = vpop.f32.mrb[0].mxu0
  %v1588 = vadd.f32 %v1327, %v1587
  %v1589 = vpop.f32.mrb[0].mxu0
  %1590 = vmatprep.mubr.f32.mxu0 0.0
  %v1591 = vand.u32 %v536, 4294901760
  %v1592 = vsub.f32 %v536, %v1591
  %v1593 = vand.u32 %v1592, 4294901760
  %1594 = vmatmul.mubr.f32.gmra.mrb[0].mxu0 %v1593
  %v1595 = vpop.f32.mrb[0].mxu0
  %v1596 = vadd.f32 %v1334, %v1595
  %v1597 = vpop.f32.mrb[0].mxu0
  %1598 = vmatprep.mubr.f32.mxu0 0.0
  %v1599 = vand.u32 %v537, 4294901760
  %v1600 = vsub.f32 %v537, %v1599
  %v1601 = vand.u32 %v1600, 4294901760
  %1602 = vmatmul.mubr.f32.gmra.mrb[0].mxu0 %v1601
  %v1603 = vpop.f32.mrb[0].mxu0
  %v1604 = vadd.f32 %v1341, %v1603
  %v1605 = vpop.f32.mrb[0].mxu0
  %1606 = vmatprep.mubr.f32.mxu0 0.0
  %v1607 = vand.u32 %v538, 4294901760
  %v1608 = vsub.f32 %v538, %v1607
  %v1609 = vand.u32 %v1608, 4294901760
  %1610 = vmatmul.mubr.f32.gmra.mrb[0].mxu0 %v1609
  %v1611 = vpop.f32.mrb[0].mxu0
  %v1612 = vadd.f32 %v1348, %v1611
  %v1613 = vpop.f32.mrb[0].mxu0
  %1614 = vmatprep.mubr.f32.mxu0 0.0
  %v1615 = vand.u32 %v539, 4294901760
  %v1616 = vsub.f32 %v539, %v1615
  %v1617 = vand.u32 %v1616, 4294901760
  %1618 = vmatmul.mubr.f32.gmra.mrb[0].mxu0 %v1617
  %v1619 = vpop.f32.mrb[0].mxu0
  %v1620 = vadd.f32 %v1355, %v1619
  %v1621 = vpop.f32.mrb[0].mxu0
  %1622 = vmatprep.mubr.f32.mxu0 0.0
  %v1623 = vand.u32 %v540, 4294901760
  %v1624 = vsub.f32 %v540, %v1623
  %v1625 = vand.u32 %v1624, 4294901760
  %1626 = vmatmul.mubr.f32.gmra.mrb[0].mxu0 %v1625
  %v1627 = vpop.f32.mrb[0].mxu0
  %v1628 = vadd.f32 %v1362, %v1627
  %v1629 = vpop.f32.mrb[0].mxu0
  %1630 = vmatprep.mubr.f32.mxu0 0.0
  %v1631 = vand.u32 %v541, 4294901760
  %v1632 = vsub.f32 %v541, %v1631
  %v1633 = vand.u32 %v1632, 4294901760
  %1634 = vmatmul.mubr.f32.gmra.mrb[0].mxu0 %v1633
  %v1635 = vpop.f32.mrb[0].mxu0
  %v1636 = vadd.f32 %v1369, %v1635
  %v1637 = vpop.f32.mrb[0].mxu0
  %1638 = vmatprep.mubr.f32.mxu0 0.0
  %v1639 = vand.u32 %v542, 4294901760
  %v1640 = vsub.f32 %v542, %v1639
  %v1641 = vand.u32 %v1640, 4294901760
  %1642 = vmatmul.mubr.f32.gmra.mrb[0].mxu0 %v1641
  %v1643 = vpop.f32.mrb[0].mxu0
  %v1644 = vadd.f32 %v1376, %v1643
  %v1645 = vpop.f32.mrb[0].mxu0
  %1646 = vmatprep.mubr.f32.mxu0 0.0
  %v1647 = vand.u32 %v543, 4294901760
  %v1648 = vsub.f32 %v543, %v1647
  %v1649 = vand.u32 %v1648, 4294901760
  %1650 = vmatmul.mubr.f32.gmra.mrb[0].mxu0 %v1649
  %v1651 = vpop.f32.mrb[0].mxu0
  %v1652 = vadd.f32 %v1383, %v1651
  %v1653 = vpop.f32.mrb[0].mxu0
  %1654 = vmatprep.mubr.f32.mxu0 0.0
  %v1655 = vand.u32 %v544, 4294901760
  %v1656 = vsub.f32 %v544, %v1655
  %v1657 = vand.u32 %v1656, 4294901760
  %1658 = vmatmul.mubr.f32.gmra.mrb[0].mxu0 %v1657
  %v1659 = vpop.f32.mrb[0].mxu0
  %v1660 = vadd.f32 %v1390, %v1659
  %v1661 = vpop.f32.mrb[0].mxu0
  %1662 = vmatprep.mubr.f32.mxu0 0.0
  %v1663 = vand.u32 %v545, 4294901760
  %v1664 = vsub.f32 %v545, %v1663
  %v1665 = vand.u32 %v1664, 4294901760
  %1666 = vmatmul.mubr.f32.gmra.mrb[0].mxu0 %v1665
  %v1667 = vpop.f32.mrb[0].mxu0
  %v1668 = vadd.f32 %v1397, %v1667
  %v1669 = vpop.f32.mrb[0].mxu0
  %1670 = vmatprep.mubr.f32.mxu0 0.0
  %v1671 = vand.u32 %v546, 4294901760
  %v1672 = vsub.f32 %v546, %v1671
  %v1673 = vand.u32 %v1672, 4294901760
  %1674 = vmatmul.mubr.f32.gmra.mrb[0].mxu0 %v1673
  %v1675 = vpop.f32.mrb[0].mxu0
  %v1676 = vadd.f32 %v1404, %v1675
  %v1677 = vpop.f32.mrb[0].mxu0
  %1678 = vmatprep.mubr.f32.mxu0 0.0
  %v1679 = vand.u32 %v547, 4294901760
  %v1680 = vsub.f32 %v547, %v1679
  %v1681 = vand.u32 %v1680, 4294901760
  %1682 = vmatmul.mubr.f32.gmra.mrb[0].mxu0 %v1681
  %v1683 = vpop.f32.mrb[0].mxu0
  %v1684 = vadd.f32 %v1411, %v1683
  %v1685 = vpop.f32.mrb[0].mxu0
  %1686 = vmatprep.mubr.f32.mxu0 0.0
  %v1687 = vand.u32 %v548, 4294901760
  %v1688 = vsub.f32 %v548, %v1687
  %v1689 = vand.u32 %v1688, 4294901760
  %1690 = vmatmul.mubr.f32.gmra.mrb[0].mxu0 %v1689
  %v1691 = vpop.f32.mrb[0].mxu0
  %v1692 = vadd.f32 %v1418, %v1691
  %v1693 = vpop.f32.mrb[0].mxu0
  %1694 = vmatprep.mubr.f32.mxu0 0.0
  %v1695 = vand.u32 %v549, 4294901760
  %v1696 = vsub.f32 %v549, %v1695
  %v1697 = vand.u32 %v1696, 4294901760
  %1698 = vmatmul.mubr.f32.gmra.mrb[0].mxu0 %v1697
  %v1699 = vpop.f32.mrb[0].mxu0
  %v1700 = vadd.f32 %v1425, %v1699
  %v1701 = vpop.f32.mrb[0].mxu0
  %1702 = vmatprep.mubr.f32.mxu0 0.0
  %v1703 = vand.u32 %v550, 4294901760
  %v1704 = vsub.f32 %v550, %v1703
  %v1705 = vand.u32 %v1704, 4294901760
  %1706 = vmatmul.mubr.f32.gmra.mrb[0].mxu0 %v1705
  %v1707 = vpop.f32.mrb[0].mxu0
  %v1708 = vadd.f32 %v1432, %v1707
  %v1709 = vpop.f32.mrb[0].mxu0
  %1710 = vmatprep.mubr.f32.mxu0 0.0
  %v1711 = vand.u32 %v551, 4294901760
  %v1712 = vsub.f32 %v551, %v1711
  %v1713 = vand.u32 %v1712, 4294901760
  %1714 = vmatmul.mubr.f32.gmra.mrb[0].mxu0 %v1713
  %v1715 = vpop.f32.mrb[0].mxu0
  %v1716 = vadd.f32 %v1439, %v1715
  %v1717 = vpop.f32.mrb[0].mxu0
  %1718 = vmatprep.mubr.f32.mxu0 0.0
  %v1719 = vand.u32 %v552, 4294901760
  %v1720 = vsub.f32 %v552, %v1719
  %v1721 = vand.u32 %v1720, 4294901760
  %1722 = vmatmul.mubr.f32.gmra.mrb[0].mxu0 %v1721
  %v1723 = vpop.f32.mrb[0].mxu0
  %v1724 = vadd.f32 %v1446, %v1723
  %v1725 = vpop.f32.mrb[0].mxu0
  %1726 = vmatprep.mubr.f32.mxu0 0.0
  %v1727 = vand.u32 %v553, 4294901760
  %v1728 = vsub.f32 %v553, %v1727
  %v1729 = vand.u32 %v1728, 4294901760
  %1730 = vmatmul.mubr.f32.gmra.mrb[0].mxu0 %v1729
  %v1731 = vpop.f32.mrb[0].mxu0
  %v1732 = vadd.f32 %v1453, %v1731
  %v1733 = vpop.f32.mrb[0].mxu0
  %1734 = vmatprep.mubr.f32.mxu0 0.0
  %v1735 = vand.u32 %v554, 4294901760
  %v1736 = vsub.f32 %v554, %v1735
  %v1737 = vand.u32 %v1736, 4294901760
  %1738 = vmatmul.mubr.f32.gmra.mrb[0].mxu0 %v1737
  %v1739 = vpop.f32.mrb[0].mxu0
  %v1740 = vadd.f32 %v1460, %v1739
  %v1741 = vpop.f32.mrb[0].mxu0
  %1742 = vmatprep.mubr.f32.mxu0 0.0
  %v1743 = vand.u32 %v555, 4294901760
  %v1744 = vsub.f32 %v555, %v1743
  %v1745 = vand.u32 %v1744, 4294901760
  %1746 = vmatmul.mubr.f32.gmra.mrb[0].mxu0 %v1745
  %v1747 = vpop.f32.mrb[0].mxu0
  %v1748 = vadd.f32 %v1467, %v1747
  %v1749 = vpop.f32.mrb[0].mxu0
  %1750 = vdwg.mxu0
  %1751 = vmatprep.subr.mxu0 0.0
  %v1752 = vand.u32 %v556, 4294901760
  %v1753 = vsub.f32 %v556, %v1752
  %v1754 = vand.u32 %v1753, 4294901760
  %1755 = vmatpush1.msra.mxu0 %v1754
  %1756 = vmatprep.subr.mxu0 0.0
  %v1757 = vand.u32 %v557, 4294901760
  %v1758 = vsub.f32 %v557, %v1757
  %v1759 = vand.u32 %v1758, 4294901760
  %1760 = vmatpush1.msra.mxu0 %v1759
  %1761 = vmatprep.subr.mxu0 0.0
  %v1762 = vand.u32 %v558, 4294901760
  %v1763 = vsub.f32 %v558, %v1762
  %v1764 = vand.u32 %v1763, 4294901760
  %1765 = vmatpush1.msra.mxu0 %v1764
  %1766 = vmatprep.subr.mxu0 0.0
  %v1767 = vand.u32 %v559, 4294901760
  %v1768 = vsub.f32 %v559, %v1767
  %v1769 = vand.u32 %v1768, 4294901760
  %1770 = vmatpush1.msra.mxu0 %v1769
  %1771 = vmatprep.subr.mxu0 0.0
  %v1772 = vand.u32 %v560, 4294901760
  %v1773 = vsub.f32 %v560, %v1772
  %v1774 = vand.u32 %v1773, 4294901760
  %1775 = vmatpush1.msra.mxu0 %v1774
  %1776 = vmatprep.subr.mxu0 0.0
  %v1777 = vand.u32 %v561, 4294901760
  %v1778 = vsub.f32 %v561, %v1777
  %v1779 = vand.u32 %v1778, 4294901760
  %1780 = vmatpush1.msra.mxu0 %v1779
  %1781 = vmatprep.subr.mxu0 0.0
  %v1782 = vand.u32 %v562, 4294901760
  %v1783 = vsub.f32 %v562, %v1782
  %v1784 = vand.u32 %v1783, 4294901760
  %1785 = vmatpush1.msra.mxu0 %v1784
  %1786 = vmatprep.subr.mxu0 0.0
  %v1787 = vand.u32 %v563, 4294901760
  %v1788 = vsub.f32 %v563, %v1787
  %v1789 = vand.u32 %v1788, 4294901760
  %1790 = vmatpush1.msra.mxu0 %v1789
  %1791 = vmatprep.subr.mxu0 0.0
  %v1792 = vand.u32 %v564, 4294901760
  %v1793 = vsub.f32 %v564, %v1792
  %v1794 = vand.u32 %v1793, 4294901760
  %1795 = vmatpush1.msra.mxu0 %v1794
  %1796 = vmatprep.subr.mxu0 0.0
  %v1797 = vand.u32 %v565, 4294901760
  %v1798 = vsub.f32 %v565, %v1797
  %v1799 = vand.u32 %v1798, 4294901760
  %1800 = vmatpush1.msra.mxu0 %v1799
  %1801 = vmatprep.subr.mxu0 0.0
  %v1802 = vand.u32 %v566, 4294901760
  %v1803 = vsub.f32 %v566, %v1802
  %v1804 = vand.u32 %v1803, 4294901760
  %1805 = vmatpush1.msra.mxu0 %v1804
  %1806 = vmatprep.subr.mxu0 0.0
  %v1807 = vand.u32 %v567, 4294901760
  %v1808 = vsub.f32 %v567, %v1807
  %v1809 = vand.u32 %v1808, 4294901760
  %1810 = vmatpush1.msra.mxu0 %v1809
  %1811 = vmatprep.subr.mxu0 0.0
  %v1812 = vand.u32 %v568, 4294901760
  %v1813 = vsub.f32 %v568, %v1812
  %v1814 = vand.u32 %v1813, 4294901760
  %1815 = vmatpush1.msra.mxu0 %v1814
  %1816 = vmatprep.subr.mxu0 0.0
  %v1817 = vand.u32 %v569, 4294901760
  %v1818 = vsub.f32 %v569, %v1817
  %v1819 = vand.u32 %v1818, 4294901760
  %1820 = vmatpush1.msra.mxu0 %v1819
  %1821 = vmatprep.subr.mxu0 0.0
  %v1822 = vand.u32 %v570, 4294901760
  %v1823 = vsub.f32 %v570, %v1822
  %v1824 = vand.u32 %v1823, 4294901760
  %1825 = vmatpush1.msra.mxu0 %v1824
  %1826 = vmatprep.subr.mxu0 0.0
  %v1827 = vand.u32 %v571, 4294901760
  %v1828 = vsub.f32 %v571, %v1827
  %v1829 = vand.u32 %v1828, 4294901760
  %1830 = vmatpush1.msra.mxu0 %v1829
  %1831 = vmatprep.subr.mxu0 0.0
  %1832 = vmatpush1.msra.mxu0 0.0
  %1833 = vmatprep.subr.mxu0 0.0
  %1834 = vmatpush1.msra.mxu0 0.0
  %1835 = vmatprep.subr.mxu0 0.0
  %1836 = vmatpush1.msra.mxu0 0.0
  %1837 = vmatprep.subr.mxu0 0.0
  %1838 = vmatpush1.msra.mxu0 0.0
  %1839 = vmatprep.subr.mxu0 0.0
  %1840 = vmatpush1.msra.mxu0 0.0
  %1841 = vmatprep.subr.mxu0 0.0
  %1842 = vmatpush1.msra.mxu0 0.0
  %1843 = vmatprep.subr.mxu0 0.0
  %1844 = vmatpush1.msra.mxu0 0.0
  %1845 = vmatprep.subr.mxu0 0.0
  %1846 = vmatpush1.msra.mxu0 0.0
  %1847 = vmatprep.subr.mxu0 0.0
  %1848 = vmatpush1.msra.mxu0 0.0
  %1849 = vmatprep.subr.mxu0 0.0
  %1850 = vmatpush1.msra.mxu0 0.0
  %1851 = vmatprep.subr.mxu0 0.0
  %1852 = vmatpush1.msra.mxu0 0.0
  %1853 = vmatprep.subr.mxu0 0.0
  %1854 = vmatpush1.msra.mxu0 0.0
  %1855 = vmatprep.subr.mxu0 0.0
  %1856 = vmatpush1.msra.mxu0 0.0
  %1857 = vmatprep.subr.mxu0 0.0
  %1858 = vmatpush1.msra.mxu0 0.0
  %1859 = vmatprep.subr.mxu0 0.0
  %1860 = vmatpush1.msra.mxu0 0.0
  %1861 = vmatprep.subr.mxu0 0.0
  %1862 = vmatpush1.msra.mxu0 0.0
  %1863 = vmatprep.mubr.f32.mxu0 0.0
  %v1864 = vand.u32 %v531, 4294901760
  %1865 = vmatmul.mubr.f32.gmra.mrb[0].mxu0 %v1864
  %v1866 = vpop.f32.mrb[0].mxu0
  %v1867 = vadd.f32 %v1556, %v1866
  %v1868 = vpop.f32.mrb[0].mxu0
  %1869 = vmatprep.mubr.f32.mxu0 0.0
  %v1870 = vand.u32 %v532, 4294901760
  %1871 = vmatmul.mubr.f32.gmra.mrb[0].mxu0 %v1870
  %v1872 = vpop.f32.mrb[0].mxu0
  %v1873 = vadd.f32 %v1564, %v1872
  %v1874 = vpop.f32.mrb[0].mxu0
  %1875 = vmatprep.mubr.f32.mxu0 0.0
  %v1876 = vand.u32 %v533, 4294901760
  %1877 = vmatmul.mubr.f32.gmra.mrb[0].mxu0 %v1876
  %v1878 = vpop.f32.mrb[0].mxu0
  %v1879 = vadd.f32 %v1572, %v1878
  %v1880 = vpop.f32.mrb[0].mxu0
  %1881 = vmatprep.mubr.f32.mxu0 0.0
  %v1882 = vand.u32 %v534, 4294901760
  %1883 = vmatmul.mubr.f32.gmra.mrb[0].mxu0 %v1882
  %v1884 = vpop.f32.mrb[0].mxu0
  %v1885 = vadd.f32 %v1580, %v1884
  %v1886 = vpop.f32.mrb[0].mxu0
  %1887 = vmatprep.mubr.f32.mxu0 0.0
  %v1888 = vand.u32 %v535, 4294901760
  %1889 = vmatmul.mubr.f32.gmra.mrb[0].mxu0 %v1888
  %v1890 = vpop.f32.mrb[0].mxu0
  %v1891 = vadd.f32 %v1588, %v1890
  %v1892 = vpop.f32.mrb[0].mxu0
  %1893 = vmatprep.mubr.f32.mxu0 0.0
  %v1894 = vand.u32 %v536, 4294901760
  %1895 = vmatmul.mubr.f32.gmra.mrb[0].mxu0 %v1894
  %v1896 = vpop.f32.mrb[0].mxu0
  %v1897 = vadd.f32 %v1596, %v1896
  %v1898 = vpop.f32.mrb[0].mxu0
  %1899 = vmatprep.mubr.f32.mxu0 0.0
  %v1900 = vand.u32 %v537, 4294901760
  %1901 = vmatmul.mubr.f32.gmra.mrb[0].mxu0 %v1900
  %v1902 = vpop.f32.mrb[0].mxu0
  %v1903 = vadd.f32 %v1604, %v1902
  %v1904 = vpop.f32.mrb[0].mxu0
  %1905 = vmatprep.mubr.f32.mxu0 0.0
  %v1906 = vand.u32 %v538, 4294901760
  %1907 = vmatmul.mubr.f32.gmra.mrb[0].mxu0 %v1906
  %v1908 = vpop.f32.mrb[0].mxu0
  %v1909 = vadd.f32 %v1612, %v1908
  %v1910 = vpop.f32.mrb[0].mxu0
  %1911 = vmatprep.mubr.f32.mxu0 0.0
  %v1912 = vand.u32 %v539, 4294901760
  %1913 = vmatmul.mubr.f32.gmra.mrb[0].mxu0 %v1912
  %v1914 = vpop.f32.mrb[0].mxu0
  %v1915 = vadd.f32 %v1620, %v1914
  %v1916 = vpop.f32.mrb[0].mxu0
  %1917 = vmatprep.mubr.f32.mxu0 0.0
  %v1918 = vand.u32 %v540, 4294901760
  %1919 = vmatmul.mubr.f32.gmra.mrb[0].mxu0 %v1918
  %v1920 = vpop.f32.mrb[0].mxu0
  %v1921 = vadd.f32 %v1628, %v1920
  %v1922 = vpop.f32.mrb[0].mxu0
  %1923 = vmatprep.mubr.f32.mxu0 0.0
  %v1924 = vand.u32 %v541, 4294901760
  %1925 = vmatmul.mubr.f32.gmra.mrb[0].mxu0 %v1924
  %v1926 = vpop.f32.mrb[0].mxu0
  %v1927 = vadd.f32 %v1636, %v1926
  %v1928 = vpop.f32.mrb[0].mxu0
  %1929 = vmatprep.mubr.f32.mxu0 0.0
  %v1930 = vand.u32 %v542, 4294901760
  %1931 = vmatmul.mubr.f32.gmra.mrb[0].mxu0 %v1930
  %v1932 = vpop.f32.mrb[0].mxu0
  %v1933 = vadd.f32 %v1644, %v1932
  %v1934 = vpop.f32.mrb[0].mxu0
  %1935 = vmatprep.mubr.f32.mxu0 0.0
  %v1936 = vand.u32 %v543, 4294901760
  %1937 = vmatmul.mubr.f32.gmra.mrb[0].mxu0 %v1936
  %v1938 = vpop.f32.mrb[0].mxu0
  %v1939 = vadd.f32 %v1652, %v1938
  %v1940 = vpop.f32.mrb[0].mxu0
  %1941 = vmatprep.mubr.f32.mxu0 0.0
  %v1942 = vand.u32 %v544, 4294901760
  %1943 = vmatmul.mubr.f32.gmra.mrb[0].mxu0 %v1942
  %v1944 = vpop.f32.mrb[0].mxu0
  %v1945 = vadd.f32 %v1660, %v1944
  %v1946 = vpop.f32.mrb[0].mxu0
  %1947 = vmatprep.mubr.f32.mxu0 0.0
  %v1948 = vand.u32 %v545, 4294901760
  %1949 = vmatmul.mubr.f32.gmra.mrb[0].mxu0 %v1948
  %v1950 = vpop.f32.mrb[0].mxu0
  %v1951 = vadd.f32 %v1668, %v1950
  %v1952 = vpop.f32.mrb[0].mxu0
  %1953 = vmatprep.mubr.f32.mxu0 0.0
  %v1954 = vand.u32 %v546, 4294901760
  %1955 = vmatmul.mubr.f32.gmra.mrb[0].mxu0 %v1954
  %v1956 = vpop.f32.mrb[0].mxu0
  %v1957 = vadd.f32 %v1676, %v1956
  %v1958 = vpop.f32.mrb[0].mxu0
  %1959 = vmatprep.mubr.f32.mxu0 0.0
  %v1960 = vand.u32 %v547, 4294901760
  %1961 = vmatmul.mubr.f32.gmra.mrb[0].mxu0 %v1960
  %v1962 = vpop.f32.mrb[0].mxu0
  %v1963 = vadd.f32 %v1684, %v1962
  %v1964 = vpop.f32.mrb[0].mxu0
  %1965 = vmatprep.mubr.f32.mxu0 0.0
  %v1966 = vand.u32 %v548, 4294901760
  %1967 = vmatmul.mubr.f32.gmra.mrb[0].mxu0 %v1966
  %v1968 = vpop.f32.mrb[0].mxu0
  %v1969 = vadd.f32 %v1692, %v1968
  %v1970 = vpop.f32.mrb[0].mxu0
  %1971 = vmatprep.mubr.f32.mxu0 0.0
  %v1972 = vand.u32 %v549, 4294901760
  %1973 = vmatmul.mubr.f32.gmra.mrb[0].mxu0 %v1972
  %v1974 = vpop.f32.mrb[0].mxu0
  %v1975 = vadd.f32 %v1700, %v1974
  %v1976 = vpop.f32.mrb[0].mxu0
  %1977 = vmatprep.mubr.f32.mxu0 0.0
  %v1978 = vand.u32 %v550, 4294901760
  %1979 = vmatmul.mubr.f32.gmra.mrb[0].mxu0 %v1978
  %v1980 = vpop.f32.mrb[0].mxu0
  %v1981 = vadd.f32 %v1708, %v1980
  %v1982 = vpop.f32.mrb[0].mxu0
  %1983 = vmatprep.mubr.f32.mxu0 0.0
  %v1984 = vand.u32 %v551, 4294901760
  %1985 = vmatmul.mubr.f32.gmra.mrb[0].mxu0 %v1984
  %v1986 = vpop.f32.mrb[0].mxu0
  %v1987 = vadd.f32 %v1716, %v1986
  %v1988 = vpop.f32.mrb[0].mxu0
  %1989 = vmatprep.mubr.f32.mxu0 0.0
  %v1990 = vand.u32 %v552, 4294901760
  %1991 = vmatmul.mubr.f32.gmra.mrb[0].mxu0 %v1990
  %v1992 = vpop.f32.mrb[0].mxu0
  %v1993 = vadd.f32 %v1724, %v1992
  %v1994 = vpop.f32.mrb[0].mxu0
  %1995 = vmatprep.mubr.f32.mxu0 0.0
  %v1996 = vand.u32 %v553, 4294901760
  %1997 = vmatmul.mubr.f32.gmra.mrb[0].mxu0 %v1996
  %v1998 = vpop.f32.mrb[0].mxu0
  %v1999 = vadd.f32 %v1732, %v1998
  %v2000 = vpop.f32.mrb[0].mxu0
  %2001 = vmatprep.mubr.f32.mxu0 0.0
  %v2002 = vand.u32 %v554, 4294901760
  %2003 = vmatmul.mubr.f32.gmra.mrb[0].mxu0 %v2002
  %v2004 = vpop.f32.mrb[0].mxu0
  %v2005 = vadd.f32 %v1740, %v2004
  %v2006 = vpop.f32.mrb[0].mxu0
  %2007 = vmatprep.mubr.f32.mxu0 0.0
  %v2008 = vand.u32 %v555, 4294901760
  %2009 = vmatmul.mubr.f32.gmra.mrb[0].mxu0 %v2008
  %v2010 = vpop.f32.mrb[0].mxu0
  %v2011 = vadd.f32 %v1748, %v2010
  %v2012 = vpop.f32.mrb[0].mxu0
  %2013 = vdwg.mxu0
  %2014 = vmatprep.subr.mxu0 0.0
  %v2015 = vand.u32 %v556, 4294901760
  %2016 = vmatpush1.msra.mxu0 %v2015
  %2017 = vmatprep.subr.mxu0 0.0
  %v2018 = vand.u32 %v557, 4294901760
  %2019 = vmatpush1.msra.mxu0 %v2018
  %2020 = vmatprep.subr.mxu0 0.0
  %v2021 = vand.u32 %v558, 4294901760
  %2022 = vmatpush1.msra.mxu0 %v2021
  %2023 = vmatprep.subr.mxu0 0.0
  %v2024 = vand.u32 %v559, 4294901760
  %2025 = vmatpush1.msra.mxu0 %v2024
  %2026 = vmatprep.subr.mxu0 0.0
  %v2027 = vand.u32 %v560, 4294901760
  %2028 = vmatpush1.msra.mxu0 %v2027
  %2029 = vmatprep.subr.mxu0 0.0
  %v2030 = vand.u32 %v561, 4294901760
  %2031 = vmatpush1.msra.mxu0 %v2030
  %2032 = vmatprep.subr.mxu0 0.0
  %v2033 = vand.u32 %v562, 4294901760
  %2034 = vmatpush1.msra.mxu0 %v2033
  %2035 = vmatprep.subr.mxu0 0.0
  %v2036 = vand.u32 %v563, 4294901760
  %2037 = vmatpush1.msra.mxu0 %v2036
  %2038 = vmatprep.subr.mxu0 0.0
  %v2039 = vand.u32 %v564, 4294901760
  %2040 = vmatpush1.msra.mxu0 %v2039
  %2041 = vmatprep.subr.mxu0 0.0
  %v2042 = vand.u32 %v565, 4294901760
  %2043 = vmatpush1.msra.mxu0 %v2042
  %2044 = vmatprep.subr.mxu0 0.0
  %v2045 = vand.u32 %v566, 4294901760
  %2046 = vmatpush1.msra.mxu0 %v2045
  %2047 = vmatprep.subr.mxu0 0.0
  %v2048 = vand.u32 %v567, 4294901760
  %2049 = vmatpush1.msra.mxu0 %v2048
  %2050 = vmatprep.subr.mxu0 0.0
  %v2051 = vand.u32 %v568, 4294901760
  %2052 = vmatpush1.msra.mxu0 %v2051
  %2053 = vmatprep.subr.mxu0 0.0
  %v2054 = vand.u32 %v569, 4294901760
  %2055 = vmatpush1.msra.mxu0 %v2054
  %2056 = vmatprep.subr.mxu0 0.0
  %v2057 = vand.u32 %v570, 4294901760
  %2058 = vmatpush1.msra.mxu0 %v2057
  %2059 = vmatprep.subr.mxu0 0.0
  %v2060 = vand.u32 %v571, 4294901760
  %2061 = vmatpush1.msra.mxu0 %v2060
  %2062 = vmatprep.subr.mxu0 0.0
  %2063 = vmatpush1.msra.mxu0 0.0
  %2064 = vmatprep.subr.mxu0 0.0
  %2065 = vmatpush1.msra.mxu0 0.0
  %2066 = vmatprep.subr.mxu0 0.0
  %2067 = vmatpush1.msra.mxu0 0.0
  %2068 = vmatprep.subr.mxu0 0.0
  %2069 = vmatpush1.msra.mxu0 0.0
  %2070 = vmatprep.subr.mxu0 0.0
  %2071 = vmatpush1.msra.mxu0 0.0
  %2072 = vmatprep.subr.mxu0 0.0
  %2073 = vmatpush1.msra.mxu0 0.0
  %2074 = vmatprep.subr.mxu0 0.0
  %2075 = vmatpush1.msra.mxu0 0.0
  %2076 = vmatprep.subr.mxu0 0.0
  %2077 = vmatpush1.msra.mxu0 0.0
  %2078 = vmatprep.subr.mxu0 0.0
  %2079 = vmatpush1.msra.mxu0 0.0
  %2080 = vmatprep.subr.mxu0 0.0
  %2081 = vmatpush1.msra.mxu0 0.0
  %2082 = vmatprep.subr.mxu0 0.0
  %2083 = vmatpush1.msra.mxu0 0.0
  %2084 = vmatprep.subr.mxu0 0.0
  %2085 = vmatpush1.msra.mxu0 0.0
  %2086 = vmatprep.subr.mxu0 0.0
  %2087 = vmatpush1.msra.mxu0 0.0
  %2088 = vmatprep.subr.mxu0 0.0
  %2089 = vmatpush1.msra.mxu0 0.0
  %2090 = vmatprep.subr.mxu0 0.0
  %2091 = vmatpush1.msra.mxu0 0.0
  %2092 = vmatprep.subr.mxu0 0.0
  %2093 = vmatpush1.msra.mxu0 0.0
  %2094 = vmatprep.mubr.f32.mxu0 0.0
  %v2095 = vand.u32 %v531, 4294901760
  %2096 = vmatmul.mubr.f32.gmra.mrb[0].mxu0 %v2095
  %v2097 = vpop.f32.mrb[0].mxu0
  %v2098 = vadd.f32 %v1867, %v2097
  %v2099 = vpop.f32.mrb[0].mxu0
  %2100 = vmatprep.mubr.f32.mxu0 0.0
  %v2101 = vand.u32 %v532, 4294901760
  %2102 = vmatmul.mubr.f32.gmra.mrb[0].mxu0 %v2101
  %v2103 = vpop.f32.mrb[0].mxu0
  %v2104 = vadd.f32 %v1873, %v2103
  %v2105 = vpop.f32.mrb[0].mxu0
  %2106 = vmatprep.mubr.f32.mxu0 0.0
  %v2107 = vand.u32 %v533, 4294901760
  %2108 = vmatmul.mubr.f32.gmra.mrb[0].mxu0 %v2107
  %v2109 = vpop.f32.mrb[0].mxu0
  %v2110 = vadd.f32 %v1879, %v2109
  %v2111 = vpop.f32.mrb[0].mxu0
  %2112 = vmatprep.mubr.f32.mxu0 0.0
  %v2113 = vand.u32 %v534, 4294901760
  %2114 = vmatmul.mubr.f32.gmra.mrb[0].mxu0 %v2113
  %v2115 = vpop.f32.mrb[0].mxu0
  %v2116 = vadd.f32 %v1885, %v2115
  %v2117 = vpop.f32.mrb[0].mxu0
  %2118 = vmatprep.mubr.f32.mxu0 0.0
  %v2119 = vand.u32 %v535, 4294901760
  %2120 = vmatmul.mubr.f32.gmra.mrb[0].mxu0 %v2119
  %v2121 = vpop.f32.mrb[0].mxu0
  %v2122 = vadd.f32 %v1891, %v2121
  %v2123 = vpop.f32.mrb[0].mxu0
  %2124 = vmatprep.mubr.f32.mxu0 0.0
  %v2125 = vand.u32 %v536, 4294901760
  %2126 = vmatmul.mubr.f32.gmra.mrb[0].mxu0 %v2125
  %v2127 = vpop.f32.mrb[0].mxu0
  %v2128 = vadd.f32 %v1897, %v2127
  %v2129 = vpop.f32.mrb[0].mxu0
  %2130 = vmatprep.mubr.f32.mxu0 0.0
  %v2131 = vand.u32 %v537, 4294901760
  %2132 = vmatmul.mubr.f32.gmra.mrb[0].mxu0 %v2131
  %v2133 = vpop.f32.mrb[0].mxu0
  %v2134 = vadd.f32 %v1903, %v2133
  %v2135 = vpop.f32.mrb[0].mxu0
  %2136 = vmatprep.mubr.f32.mxu0 0.0
  %v2137 = vand.u32 %v538, 4294901760
  %2138 = vmatmul.mubr.f32.gmra.mrb[0].mxu0 %v2137
  %v2139 = vpop.f32.mrb[0].mxu0
  %v2140 = vadd.f32 %v1909, %v2139
  %v2141 = vpop.f32.mrb[0].mxu0
  %2142 = vmatprep.mubr.f32.mxu0 0.0
  %v2143 = vand.u32 %v539, 4294901760
  %2144 = vmatmul.mubr.f32.gmra.mrb[0].mxu0 %v2143
  %v2145 = vpop.f32.mrb[0].mxu0
  %v2146 = vadd.f32 %v1915, %v2145
  %v2147 = vpop.f32.mrb[0].mxu0
  %2148 = vmatprep.mubr.f32.mxu0 0.0
  %v2149 = vand.u32 %v540, 4294901760
  %2150 = vmatmul.mubr.f32.gmra.mrb[0].mxu0 %v2149
  %v2151 = vpop.f32.mrb[0].mxu0
  %v2152 = vadd.f32 %v1921, %v2151
  %v2153 = vpop.f32.mrb[0].mxu0
  %2154 = vmatprep.mubr.f32.mxu0 0.0
  %v2155 = vand.u32 %v541, 4294901760
  %2156 = vmatmul.mubr.f32.gmra.mrb[0].mxu0 %v2155
  %v2157 = vpop.f32.mrb[0].mxu0
  %v2158 = vadd.f32 %v1927, %v2157
  %v2159 = vpop.f32.mrb[0].mxu0
  %2160 = vmatprep.mubr.f32.mxu0 0.0
  %v2161 = vand.u32 %v542, 4294901760
  %2162 = vmatmul.mubr.f32.gmra.mrb[0].mxu0 %v2161
  %v2163 = vpop.f32.mrb[0].mxu0
  %v2164 = vadd.f32 %v1933, %v2163
  %v2165 = vpop.f32.mrb[0].mxu0
  %2166 = vmatprep.mubr.f32.mxu0 0.0
  %v2167 = vand.u32 %v543, 4294901760
  %2168 = vmatmul.mubr.f32.gmra.mrb[0].mxu0 %v2167
  %v2169 = vpop.f32.mrb[0].mxu0
  %v2170 = vadd.f32 %v1939, %v2169
  %v2171 = vpop.f32.mrb[0].mxu0
  %2172 = vmatprep.mubr.f32.mxu0 0.0
  %v2173 = vand.u32 %v544, 4294901760
  %2174 = vmatmul.mubr.f32.gmra.mrb[0].mxu0 %v2173
  %v2175 = vpop.f32.mrb[0].mxu0
  %v2176 = vadd.f32 %v1945, %v2175
  %v2177 = vpop.f32.mrb[0].mxu0
  %2178 = vmatprep.mubr.f32.mxu0 0.0
  %v2179 = vand.u32 %v545, 4294901760
  %2180 = vmatmul.mubr.f32.gmra.mrb[0].mxu0 %v2179
  %v2181 = vpop.f32.mrb[0].mxu0
  %v2182 = vadd.f32 %v1951, %v2181
  %v2183 = vpop.f32.mrb[0].mxu0
  %2184 = vmatprep.mubr.f32.mxu0 0.0
  %v2185 = vand.u32 %v546, 4294901760
  %2186 = vmatmul.mubr.f32.gmra.mrb[0].mxu0 %v2185
  %v2187 = vpop.f32.mrb[0].mxu0
  %v2188 = vadd.f32 %v1957, %v2187
  %v2189 = vpop.f32.mrb[0].mxu0
  %2190 = vmatprep.mubr.f32.mxu0 0.0
  %v2191 = vand.u32 %v547, 4294901760
  %2192 = vmatmul.mubr.f32.gmra.mrb[0].mxu0 %v2191
  %v2193 = vpop.f32.mrb[0].mxu0
  %v2194 = vadd.f32 %v1963, %v2193
  %v2195 = vpop.f32.mrb[0].mxu0
  %2196 = vmatprep.mubr.f32.mxu0 0.0
  %v2197 = vand.u32 %v548, 4294901760
  %2198 = vmatmul.mubr.f32.gmra.mrb[0].mxu0 %v2197
  %v2199 = vpop.f32.mrb[0].mxu0
  %v2200 = vadd.f32 %v1969, %v2199
  %v2201 = vpop.f32.mrb[0].mxu0
  %2202 = vmatprep.mubr.f32.mxu0 0.0
  %v2203 = vand.u32 %v549, 4294901760
  %2204 = vmatmul.mubr.f32.gmra.mrb[0].mxu0 %v2203
  %v2205 = vpop.f32.mrb[0].mxu0
  %v2206 = vadd.f32 %v1975, %v2205
  %v2207 = vpop.f32.mrb[0].mxu0
  %2208 = vmatprep.mubr.f32.mxu0 0.0
  %v2209 = vand.u32 %v550, 4294901760
  %2210 = vmatmul.mubr.f32.gmra.mrb[0].mxu0 %v2209
  %v2211 = vpop.f32.mrb[0].mxu0
  %v2212 = vadd.f32 %v1981, %v2211
  %v2213 = vpop.f32.mrb[0].mxu0
  %2214 = vmatprep.mubr.f32.mxu0 0.0
  %v2215 = vand.u32 %v551, 4294901760
  %2216 = vmatmul.mubr.f32.gmra.mrb[0].mxu0 %v2215
  %v2217 = vpop.f32.mrb[0].mxu0
  %v2218 = vadd.f32 %v1987, %v2217
  %v2219 = vpop.f32.mrb[0].mxu0
  %2220 = vmatprep.mubr.f32.mxu0 0.0
  %v2221 = vand.u32 %v552, 4294901760
  %2222 = vmatmul.mubr.f32.gmra.mrb[0].mxu0 %v2221
  %v2223 = vpop.f32.mrb[0].mxu0
  %v2224 = vadd.f32 %v1993, %v2223
  %v2225 = vpop.f32.mrb[0].mxu0
  %2226 = vmatprep.mubr.f32.mxu0 0.0
  %v2227 = vand.u32 %v553, 4294901760
  %2228 = vmatmul.mubr.f32.gmra.mrb[0].mxu0 %v2227
  %v2229 = vpop.f32.mrb[0].mxu0
  %v2230 = vadd.f32 %v1999, %v2229
  %v2231 = vpop.f32.mrb[0].mxu0
  %2232 = vmatprep.mubr.f32.mxu0 0.0
  %v2233 = vand.u32 %v554, 4294901760
  %2234 = vmatmul.mubr.f32.gmra.mrb[0].mxu0 %v2233
  %v2235 = vpop.f32.mrb[0].mxu0
  %v2236 = vadd.f32 %v2005, %v2235
  %v2237 = vpop.f32.mrb[0].mxu0
  %2238 = vmatprep.mubr.f32.mxu0 0.0
  %v2239 = vand.u32 %v555, 4294901760
  %2240 = vmatmul.mubr.f32.gmra.mrb[0].mxu0 %v2239
  %v2241 = vpop.f32.mrb[0].mxu0
  %v2242 = vadd.f32 %v2011, %v2241
  %v2243 = vpop.f32.mrb[0].mxu0
  %2244 = vdwg.mxu0
  %2245 = vst [vmem:[%s2] sm:$0xff] %v2098
  %2246 = vst [vmem:[%s2 + $0x8] sm:$0xff] %v2104
  %2247 = vst [vmem:[%s2 + $0x10] sm:$0xff] %v2110
  %2248 = vst [vmem:[%s2 + $0x18] sm:$0xff] %v2116
  %2249 = vst [vmem:[%s2 + $0x20] sm:$0xff] %v2122
  %2250 = vst [vmem:[%s2 + $0x28] sm:$0xff] %v2128
  %2251 = vst [vmem:[%s2 + $0x30] sm:$0xff] %v2134
  %2252 = vst [vmem:[%s2 + $0x38] sm:$0xff] %v2140
  %2253 = vst [vmem:[%s2 + $0x40] sm:$0xff] %v2146
  %2254 = vst [vmem:[%s2 + $0x48] sm:$0xff] %v2152
  %2255 = vst [vmem:[%s2 + $0x50] sm:$0xff] %v2158
  %2256 = vst [vmem:[%s2 + $0x58] sm:$0xff] %v2164
  %2257 = vst [vmem:[%s2 + $0x60] sm:$0xff] %v2170
  %2258 = vst [vmem:[%s2 + $0x68] sm:$0xff] %v2176
  %2259 = vst [vmem:[%s2 + $0x70] sm:$0xff] %v2182
  %2260 = vst [vmem:[%s2 + $0x78] sm:$0xff] %v2188
  %2261 = vst [vmem:[%s2 + $0x80] sm:$0xff] %v2194
  %2262 = vst [vmem:[%s2 + $0x88] sm:$0xff] %v2200
  %2263 = vst [vmem:[%s2 + $0x90] sm:$0xff] %v2206
  %2264 = vst [vmem:[%s2 + $0x98] sm:$0xff] %v2212
  %2265 = vst [vmem:[%s2 + $0xa0] sm:$0xff] %v2218
  %2266 = vst [vmem:[%s2 + $0xa8] sm:$0xff] %v2224
  %2267 = vst [vmem:[%s2 + $0xb0] sm:$0xff] %v2230
  %2268 = vst [vmem:[%s2 + $0xb8] sm:$0xff] %v2236
  %2269 = vst [vmem:[%s2 + $0xc0] sm:$0xff] %v2242
  // Predicated region
  $region10: #{net_forward.1} parent=0 // pred_check
    _
  $region11: #{net_forward.1} parent=0 // pred_check_branch
    %2271 = sbr.rel (0) target = $region13
  $region12: #{net_forward.1} parent=0 // pred_region
    _
  $region13: #{net_forward.1} parent=0 // pred_fallthru
    _
  // Predicated region
  $region14: #{net_forward.1} parent=0 // pred_check
    _
  $region15: #{net_forward.1} parent=0 // pred_check_branch
    %2273 = sbr.rel (0) target = $region17
  $region16: #{net_forward.1} parent=0 // pred_region
    _
  $region17: #{net_forward.1} parent=0 // pred_fallthru
    _

</llo_original>
